<compile_context>
chip_gen: v5e
topology: v5e:2x2
jax: 0.10.0
libtpu: 0.0.40
codegen_flags: <defaults>
</compile_context>

<pallas_src>
import math
from functools import partial

import jax
import jax.numpy as jnp
from jax.experimental import pallas as pl
from jax.experimental.pallas import tpu as pltpu


NEG_SLOPE = 0.01  # PyTorch LeakyReLU default negative_slope


def _leaky(v):
    return jnp.where(v >= 0, v, NEG_SLOPE * v)


def _make_kernel(TB, S, F, H, Z, brow):
    """brow: bias name -> (row index in bias slab, width)."""

    def kernel(x_ref, n_ref, bias_ref, bdm_ref,
               W1, W2, W3, W4, W5, Whm, Whv, W7, W8, Wdm3, Wd1, Wd2, Wd3,
               lat_ref, dec_ref):

        def bias(name):
            r, w = brow[name]
            return bias_ref[r:r + 1, 0:w]                    # (1, w) f32

        def lin(h, W, name):
            # bf16 MXU matmul with f32 accumulation, f32 bias add.
            return (jnp.dot(h.astype(jnp.bfloat16), W[...],
                            preferred_element_type=jnp.float32) + bias(name))

        # ---------------- encoder ------------------------------------------
        x = x_ref[...].astype(jnp.float32)                   # (TB*S, F)
        h = _leaky(lin(x, W1, "e1"))                         # Dropout = identity
        h = _leaky(lin(h, W2, "e2"))
        h = _leaky(lin(h, W3, "e3"))                         # (TB*S, H)

        # torch.sum(feature_output, dim=1): sublane reduce over the set axis.
        set_agr = jnp.sum(h.reshape(TB, S, H), axis=1)       # (TB, H)

        g = _leaky(lin(set_agr, W4, "s1"))
        g = _leaky(lin(g, W5, "s2"))                         # (TB, H)

        # encoder set_mlp tail (H->4Z, no activation) folded into latent heads
        mean = lin(g, Whm, "hm")                             # (TB, Z)
        log_var = lin(g, Whv, "hv")                          # (TB, Z)

        # reparameterize: z = mean + var_weight * exp(log_var / 2) * N
        z = mean + jnp.exp(log_var * 0.5) * n_ref[...]       # (TB, Z)

        # ---------------- decoder ------------------------------------------
        d = _leaky(lin(z, W7, "d1"))
        d = _leaky(lin(d, W8, "d2"))                         # (TB, H)

        # decoder set_mlp tail (H->H, no activation) folded into MultiLinear:
        # batched matmul over the set axis, Wdm3[s] is (H, F).
        d_b = jnp.broadcast_to(d.astype(jnp.bfloat16)[None], (S, TB, H))
        m = jnp.einsum("sbh,shf->sbf", d_b, Wdm3[...],
                       preferred_element_type=jnp.float32)
        m = _leaky(m + bdm_ref[...])                         # (S, TB, F)

        def elem_lin(h3, W, name):
            # same (F, F) linear applied to every set element (no zero padding)
            Wb = jnp.broadcast_to(W[...][None], (S,) + W.shape)
            return (jnp.einsum("sbf,sfg->sbg", h3.astype(jnp.bfloat16), Wb,
                               preferred_element_type=jnp.float32) + bias(name))

        f = _leaky(elem_lin(m, Wd1, "f1"))
        f = _leaky(elem_lin(f, Wd2, "f2"))
        f = _leaky(elem_lin(f, Wd3, "f3"))                   # (S, TB, F)

        # ---------------- outputs ------------------------------------------
        lat_ref[0] = z
        lat_ref[1] = mean
        lat_ref[2] = log_var
        dec_ref[...] = f

    return kernel


def _linear_params(key, fan_in, fan_out):
    """Deterministic init mimicking PyTorch Linear defaults (+/- 1/sqrt(fan_in))."""
    kw, kb = jax.random.split(key)
    bound = 1.0 / math.sqrt(fan_in)
    W = jax.random.uniform(kw, (fan_in, fan_out), jnp.float32, -bound, bound)
    b = jax.random.uniform(kb, (1, fan_out), jnp.float32, -bound, bound)
    return W, b


def init_deepset_vae_params(key, feature_size, set_size, hidden, z_dim):
    F, S, H, Z = feature_size, set_size, hidden, z_dim
    keys = iter(jax.random.split(key, 32))
    p = {}
    # encoder.feature_mlp: F -> 2F -> 2F -> H
    p["e_f1"] = _linear_params(next(keys), F, 2 * F)
    p["e_f2"] = _linear_params(next(keys), 2 * F, 2 * F)
    p["e_f3"] = _linear_params(next(keys), 2 * F, H)
    # encoder.set_mlp: H -> H -> H -> 4Z
    p["e_s1"] = _linear_params(next(keys), H, H)
    p["e_s2"] = _linear_params(next(keys), H, H)
    p["e_s3"] = _linear_params(next(keys), H, 4 * Z)
    # latent heads
    p["z_mean"] = _linear_params(next(keys), 4 * Z, Z)
    p["z_logvar"] = _linear_params(next(keys), 4 * Z, Z)
    # decoder.set_mlp: Z -> H -> H -> H
    p["d_s1"] = _linear_params(next(keys), Z, H)
    p["d_s2"] = _linear_params(next(keys), H, H)
    p["d_s3"] = _linear_params(next(keys), H, H)
    # decoder.inv_aggregate MultiLinear: H -> S*F (columns are (s, f) row-major)
    p["ml"] = _linear_params(next(keys), H, S * F)
    # decoder.feature_mlp: F -> F (x3)
    p["d_f1"] = _linear_params(next(keys), F, F)
    p["d_f2"] = _linear_params(next(keys), F, F)
    p["d_f3"] = _linear_params(next(keys), F, F)
    return p


def _pick_batch_tile(B):
    for tb in (256, 128, 64, 32, 16, 8):
        if tb <= B and B % tb == 0:
            return tb
    return B


@partial(jax.jit, static_argnames=("set_size", "hidden", "z_dim"))
def deepset_vae_forward(x, noise, params, *, set_size, hidden, z_dim):
    B, S, F = x.shape
    assert S == set_size
    H, Z = hidden, z_dim
    TB = _pick_batch_tile(B)
    nb = B // TB
    f32, bf16 = jnp.float32, jnp.bfloat16

    x_flat = x.reshape(B * S, F).astype(f32)      # glue reshape
    noise = noise.astype(f32)

    # ---- fold activation-free linear chains (trace-time, exact up to rounding)
    W6, b6 = params["e_s3"]
    Wm, bm = params["z_mean"]
    Wv, bv = params["z_logvar"]
    Whm, bhm = W6 @ Wm, b6 @ Wm + bm              # (H, Z), (1, Z)
    Whv, bhv = W6 @ Wv, b6 @ Wv + bv

    W9, b9 = params["d_s3"]
    Wml, bml = params["ml"]
    Wdm = W9 @ Wml                                # (H, S*F)
    bdm = (b9 @ Wml + bml).reshape(S, 1, F)       # (S, 1, F)
    Wdm3 = Wdm.reshape(H, S, F).transpose(1, 0, 2)  # (S, H, F)

    # ---- pack per-layer biases into a single lane-padded f32 slab (one DMA)
    biases = [
        ("e1", params["e_f1"][1]), ("e2", params["e_f2"][1]), ("e3", params["e_f3"][1]),
        ("s1", params["e_s1"][1]), ("s2", params["e_s2"][1]),
        ("hm", bhm), ("hv", bhv),
        ("d1", params["d_s1"][1]), ("d2", params["d_s2"][1]),
        ("f1", params["d_f1"][1]), ("f2", params["d_f2"][1]), ("f3", params["d_f3"][1]),
    ]
    maxw = max(b.shape[-1] for _, b in biases)
    maxw = ((maxw + 127) // 128) * 128
    rows, brow = [], {}
    for i, (name, b) in enumerate(biases):
        bflat = b.reshape(-1).astype(f32)
        rows.append(jnp.pad(bflat, (0, maxw - bflat.shape[0])))
        brow[name] = (i, bflat.shape[0])
    bias_slab = jnp.stack(rows, axis=0)           # (12, maxw) f32

    weights = [
        params["e_f1"][0], params["e_f2"][0], params["e_f3"][0],
        params["e_s1"][0], params["e_s2"][0],
        Whm, Whv,
        params["d_s1"][0], params["d_s2"][0],
        Wdm3,
        params["d_f1"][0], params["d_f2"][0], params["d_f3"][0],
    ]
    weights = [w.astype(bf16) for w in weights]   # bf16 MXU operands

    const_args = [bias_slab, bdm.astype(f32)] + weights
    args = [x_flat, noise] + const_args

    def resident(a):
        zeros = (0,) * a.ndim
        return pl.BlockSpec(a.shape, lambda i, z=zeros: z)  # DMA'd once, VMEM-resident

    in_specs = (
        [pl.BlockSpec((TB * S, F), lambda i: (i, 0)),
         pl.BlockSpec((TB, Z), lambda i: (i, 0))]
        + [resident(a) for a in const_args]
    )
    out_specs = (
        pl.BlockSpec((3, TB, Z), lambda i: (0, i, 0)),       # packed z/mean/logvar
        pl.BlockSpec((S, TB, F), lambda i: (0, i, 0)),       # decoded, set-major
    )
    out_shape = (
        jax.ShapeDtypeStruct((3, B, Z), f32),
        jax.ShapeDtypeStruct((S, B, F), f32),
    )

    lat, dec = pl.pallas_call(
        _make_kernel(TB, S, F, H, Z, brow),
        grid=(nb,),
        in_specs=in_specs,
        out_specs=out_specs,
        out_shape=out_shape,
        compiler_params=pltpu.CompilerParams(
            dimension_semantics=("parallel",),
            vmem_limit_bytes=32 * 1024 * 1024),
    )(*args)

    encoded, mean, log_var = lat[0], lat[1], lat[2]
    decoded = jnp.transpose(dec, (1, 0, 2))       # (B, S, F) glue transpose
    return encoded, mean, log_var, decoded


if __name__ == "__main__":
    # small shapes consistent with the module
    B, S, F, H, Z = 2, 8, 8, 32, 4

    key = jax.random.PRNGKey(0)
    k_x, k_n, k_p = jax.random.split(key, 3)

    x = jax.random.normal(k_x, (B, S, F), jnp.float32)
    noise = jax.random.normal(k_n, (B, Z), jnp.float32)   # reparameterization noise
    params = init_deepset_vae_params(k_p, F, S, H, Z)

    encoded, mean, log_var, decoded = deepset_vae_forward(
        x, noise, params, set_size=S, hidden=H, z_dim=Z)
    jax.block_until_ready((encoded, mean, log_var, decoded))

    assert encoded.shape == (B, Z)
    assert mean.shape == (B, Z)
    assert log_var.shape == (B, Z)
    assert decoded.shape == (B, S, F)
    assert bool(jnp.all(jnp.isfinite(decoded)))
    print("KERNEL_OK")
</pallas_src>

<mosaic_0001>
module attributes {stable_mosaic.version = 11 : i64} {
  func.func @kernel(%arg0: i32, %arg1: memref<16x8xf32, #tpu.memory_space<vmem>>, %arg2: memref<2x4xf32, #tpu.memory_space<vmem>>, %arg3: memref<12x128xf32, #tpu.memory_space<vmem>>, %arg4: memref<8x1x8xf32, #tpu.memory_space<vmem>>, %arg5: memref<8x16xbf16, #tpu.memory_space<vmem>>, %arg6: memref<16x16xbf16, #tpu.memory_space<vmem>>, %arg7: memref<16x32xbf16, #tpu.memory_space<vmem>>, %arg8: memref<32x32xbf16, #tpu.memory_space<vmem>>, %arg9: memref<32x32xbf16, #tpu.memory_space<vmem>>, %arg10: memref<32x4xbf16, #tpu.memory_space<vmem>>, %arg11: memref<32x4xbf16, #tpu.memory_space<vmem>>, %arg12: memref<4x32xbf16, #tpu.memory_space<vmem>>, %arg13: memref<32x32xbf16, #tpu.memory_space<vmem>>, %arg14: memref<8x32x8xbf16, #tpu.memory_space<vmem>>, %arg15: memref<8x8xbf16, #tpu.memory_space<vmem>>, %arg16: memref<8x8xbf16, #tpu.memory_space<vmem>>, %arg17: memref<8x8xbf16, #tpu.memory_space<vmem>>, %arg18: memref<3x2x4xf32, #tpu.memory_space<vmem>>, %arg19: memref<8x2x8xf32, #tpu.memory_space<vmem>>) attributes {dimension_semantics = [#tpu.dimension_semantics<parallel>], iteration_bounds = array<i64: 1>, scalar_prefetch = 0 : i64, scratch_operands = 0 : i64, tpu.core_type = #tpu.core_type<tc>, window_params = [{transform_indices = @transform_0, window_bounds = array<i64: 16, 8>}, {transform_indices = @transform_1, window_bounds = array<i64: 2, 4>}, {pipeline_mode = #tpu.pipeline_mode<synchronous>, transform_indices = @transform_2, window_bounds = array<i64: 12, 128>}, {pipeline_mode = #tpu.pipeline_mode<synchronous>, transform_indices = @transform_3, window_bounds = array<i64: 8, 1, 8>}, {pipeline_mode = #tpu.pipeline_mode<synchronous>, transform_indices = @transform_4, window_bounds = array<i64: 8, 16>}, {pipeline_mode = #tpu.pipeline_mode<synchronous>, transform_indices = @transform_5, window_bounds = array<i64: 16, 16>}, {pipeline_mode = #tpu.pipeline_mode<synchronous>, transform_indices = @transform_6, window_bounds = array<i64: 16, 32>}, {pipeline_mode = #tpu.pipeline_mode<synchronous>, transform_indices = @transform_7, window_bounds = array<i64: 32, 32>}, {pipeline_mode = #tpu.pipeline_mode<synchronous>, transform_indices = @transform_8, window_bounds = array<i64: 32, 32>}, {pipeline_mode = #tpu.pipeline_mode<synchronous>, transform_indices = @transform_9, window_bounds = array<i64: 32, 4>}, {pipeline_mode = #tpu.pipeline_mode<synchronous>, transform_indices = @transform_10, window_bounds = array<i64: 32, 4>}, {pipeline_mode = #tpu.pipeline_mode<synchronous>, transform_indices = @transform_11, window_bounds = array<i64: 4, 32>}, {pipeline_mode = #tpu.pipeline_mode<synchronous>, transform_indices = @transform_12, window_bounds = array<i64: 32, 32>}, {pipeline_mode = #tpu.pipeline_mode<synchronous>, transform_indices = @transform_13, window_bounds = array<i64: 8, 32, 8>}, {pipeline_mode = #tpu.pipeline_mode<synchronous>, transform_indices = @transform_14, window_bounds = array<i64: 8, 8>}, {pipeline_mode = #tpu.pipeline_mode<synchronous>, transform_indices = @transform_15, window_bounds = array<i64: 8, 8>}, {pipeline_mode = #tpu.pipeline_mode<synchronous>, transform_indices = @transform_16, window_bounds = array<i64: 8, 8>}, {transform_indices = @transform_17, window_bounds = array<i64: 3, 2, 4>}, {transform_indices = @transform_18, window_bounds = array<i64: 8, 2, 8>}]} {
    %c0 = arith.constant 0 : index
    %c0_0 = arith.constant 0 : index
    %0 = vector.load %arg1[%c0, %c0_0] : memref<16x8xf32, #tpu.memory_space<vmem>>, vector<16x8xf32>
    %1 = arith.truncf %0 : vector<16x8xf32> to vector<16x8xbf16>
    %c0_1 = arith.constant 0 : index
    %c0_2 = arith.constant 0 : index
    %2 = vector.load %arg5[%c0_1, %c0_2] : memref<8x16xbf16, #tpu.memory_space<vmem>>, vector<8x16xbf16>
    %cst = arith.constant dense<0.000000e+00> : vector<16x16xf32>
    %3 = tpu.matmul %1, %2, %cst {dimension_numbers = #tpu.dot_dimension_numbers<[1], [0], [0], [1], [0, 0, 1, 1], [], []>} : vector<16x8xbf16>, vector<8x16xbf16>, vector<16x16xf32> -> vector<16x16xf32>
    %c0_3 = arith.constant 0 : index
    %c0_4 = arith.constant 0 : index
    %4 = vector.load %arg3[%c0_3, %c0_4] : memref<12x128xf32, #tpu.memory_space<vmem>>, vector<1x16xf32>
    %5 = vector.broadcast %4 : vector<1x16xf32> to vector<16x16xf32>
    %6 = arith.addf %3, %5 : vector<16x16xf32>
    %cst_5 = arith.constant 0.000000e+00 : f32
    %7 = vector.broadcast %cst_5 : f32 to vector<16x16xf32>
    %8 = arith.cmpf oge, %6, %7 : vector<16x16xf32>
    %cst_6 = arith.constant 0.00999999977 : f32
    %9 = vector.broadcast %cst_6 : f32 to vector<16x16xf32>
    %10 = arith.mulf %9, %6 : vector<16x16xf32>
    %11 = arith.select %8, %6, %10 : vector<16x16xi1>, vector<16x16xf32>
    %12 = arith.truncf %11 : vector<16x16xf32> to vector<16x16xbf16>
    %c0_7 = arith.constant 0 : index
    %c0_8 = arith.constant 0 : index
    %13 = vector.load %arg6[%c0_7, %c0_8] : memref<16x16xbf16, #tpu.memory_space<vmem>>, vector<16x16xbf16>
    %cst_9 = arith.constant dense<0.000000e+00> : vector<16x16xf32>
    %14 = tpu.matmul %12, %13, %cst_9 {dimension_numbers = #tpu.dot_dimension_numbers<[1], [0], [0], [1], [0, 0, 1, 1], [], []>} : vector<16x16xbf16>, vector<16x16xbf16>, vector<16x16xf32> -> vector<16x16xf32>
    %c1 = arith.constant 1 : index
    %c0_10 = arith.constant 0 : index
    %15 = vector.load %arg3[%c1, %c0_10] : memref<12x128xf32, #tpu.memory_space<vmem>>, vector<1x16xf32>
    %16 = vector.broadcast %15 : vector<1x16xf32> to vector<16x16xf32>
    %17 = arith.addf %14, %16 : vector<16x16xf32>
    %cst_11 = arith.constant 0.000000e+00 : f32
    %18 = vector.broadcast %cst_11 : f32 to vector<16x16xf32>
    %19 = arith.cmpf oge, %17, %18 : vector<16x16xf32>
    %cst_12 = arith.constant 0.00999999977 : f32
    %20 = vector.broadcast %cst_12 : f32 to vector<16x16xf32>
    %21 = arith.mulf %20, %17 : vector<16x16xf32>
    %22 = arith.select %19, %17, %21 : vector<16x16xi1>, vector<16x16xf32>
    %23 = arith.truncf %22 : vector<16x16xf32> to vector<16x16xbf16>
    %c0_13 = arith.constant 0 : index
    %c0_14 = arith.constant 0 : index
    %24 = vector.load %arg7[%c0_13, %c0_14] : memref<16x32xbf16, #tpu.memory_space<vmem>>, vector<16x32xbf16>
    %cst_15 = arith.constant dense<0.000000e+00> : vector<16x32xf32>
    %25 = tpu.matmul %23, %24, %cst_15 {dimension_numbers = #tpu.dot_dimension_numbers<[1], [0], [0], [1], [0, 0, 1, 1], [], []>} : vector<16x16xbf16>, vector<16x32xbf16>, vector<16x32xf32> -> vector<16x32xf32>
    %c2 = arith.constant 2 : index
    %c0_16 = arith.constant 0 : index
    %26 = vector.load %arg3[%c2, %c0_16] : memref<12x128xf32, #tpu.memory_space<vmem>>, vector<1x32xf32>
    %27 = vector.broadcast %26 : vector<1x32xf32> to vector<16x32xf32>
    %28 = arith.addf %25, %27 : vector<16x32xf32>
    %cst_17 = arith.constant 0.000000e+00 : f32
    %29 = vector.broadcast %cst_17 : f32 to vector<16x32xf32>
    %30 = arith.cmpf oge, %28, %29 : vector<16x32xf32>
    %cst_18 = arith.constant 0.00999999977 : f32
    %31 = vector.broadcast %cst_18 : f32 to vector<16x32xf32>
    %32 = arith.mulf %31, %28 : vector<16x32xf32>
    %33 = arith.select %30, %28, %32 : vector<16x32xi1>, vector<16x32xf32>
    %34 = vector.shape_cast %33 : vector<16x32xf32> to vector<2x8x32xf32>
    %cst_19 = arith.constant dense<0.000000e+00> : vector<2x32xf32>
    %35 = vector.multi_reduction <add>, %34, %cst_19 [1] : vector<2x8x32xf32> to vector<2x32xf32>
    %36 = arith.truncf %35 : vector<2x32xf32> to vector<2x32xbf16>
    %c0_20 = arith.constant 0 : index
    %c0_21 = arith.constant 0 : index
    %37 = vector.load %arg8[%c0_20, %c0_21] : memref<32x32xbf16, #tpu.memory_space<vmem>>, vector<32x32xbf16>
    %cst_22 = arith.constant dense<0.000000e+00> : vector<2x32xf32>
    %38 = tpu.matmul %36, %37, %cst_22 {dimension_numbers = #tpu.dot_dimension_numbers<[1], [0], [0], [1], [0, 0, 1, 1], [], []>} : vector<2x32xbf16>, vector<32x32xbf16>, vector<2x32xf32> -> vector<2x32xf32>
    %c3 = arith.constant 3 : index
    %c0_23 = arith.constant 0 : index
    %39 = vector.load %arg3[%c3, %c0_23] : memref<12x128xf32, #tpu.memory_space<vmem>>, vector<1x32xf32>
    %40 = vector.broadcast %39 : vector<1x32xf32> to vector<2x32xf32>
    %41 = arith.addf %38, %40 : vector<2x32xf32>
    %cst_24 = arith.constant 0.000000e+00 : f32
    %42 = vector.broadcast %cst_24 : f32 to vector<2x32xf32>
    %43 = arith.cmpf oge, %41, %42 : vector<2x32xf32>
    %cst_25 = arith.constant 0.00999999977 : f32
    %44 = vector.broadcast %cst_25 : f32 to vector<2x32xf32>
    %45 = arith.mulf %44, %41 : vector<2x32xf32>
    %46 = arith.select %43, %41, %45 : vector<2x32xi1>, vector<2x32xf32>
    %47 = arith.truncf %46 : vector<2x32xf32> to vector<2x32xbf16>
    %c0_26 = arith.constant 0 : index
    %c0_27 = arith.constant 0 : index
    %48 = vector.load %arg9[%c0_26, %c0_27] : memref<32x32xbf16, #tpu.memory_space<vmem>>, vector<32x32xbf16>
    %cst_28 = arith.constant dense<0.000000e+00> : vector<2x32xf32>
    %49 = tpu.matmul %47, %48, %cst_28 {dimension_numbers = #tpu.dot_dimension_numbers<[1], [0], [0], [1], [0, 0, 1, 1], [], []>} : vector<2x32xbf16>, vector<32x32xbf16>, vector<2x32xf32> -> vector<2x32xf32>
    %c4 = arith.constant 4 : index
    %c0_29 = arith.constant 0 : index
    %50 = vector.load %arg3[%c4, %c0_29] : memref<12x128xf32, #tpu.memory_space<vmem>>, vector<1x32xf32>
    %51 = vector.broadcast %50 : vector<1x32xf32> to vector<2x32xf32>
    %52 = arith.addf %49, %51 : vector<2x32xf32>
    %cst_30 = arith.constant 0.000000e+00 : f32
    %53 = vector.broadcast %cst_30 : f32 to vector<2x32xf32>
    %54 = arith.cmpf oge, %52, %53 : vector<2x32xf32>
    %cst_31 = arith.constant 0.00999999977 : f32
    %55 = vector.broadcast %cst_31 : f32 to vector<2x32xf32>
    %56 = arith.mulf %55, %52 : vector<2x32xf32>
    %57 = arith.select %54, %52, %56 : vector<2x32xi1>, vector<2x32xf32>
    %58 = arith.truncf %57 : vector<2x32xf32> to vector<2x32xbf16>
    %c0_32 = arith.constant 0 : index
    %c0_33 = arith.constant 0 : index
    %59 = vector.load %arg10[%c0_32, %c0_33] : memref<32x4xbf16, #tpu.memory_space<vmem>>, vector<32x4xbf16>
    %cst_34 = arith.constant dense<0.000000e+00> : vector<2x4xf32>
    %60 = tpu.matmul %58, %59, %cst_34 {dimension_numbers = #tpu.dot_dimension_numbers<[1], [0], [0], [1], [0, 0, 1, 1], [], []>} : vector<2x32xbf16>, vector<32x4xbf16>, vector<2x4xf32> -> vector<2x4xf32>
    %c5 = arith.constant 5 : index
    %c0_35 = arith.constant 0 : index
    %61 = vector.load %arg3[%c5, %c0_35] : memref<12x128xf32, #tpu.memory_space<vmem>>, vector<1x4xf32>
    %62 = vector.broadcast %61 : vector<1x4xf32> to vector<2x4xf32>
    %63 = arith.addf %60, %62 : vector<2x4xf32>
    %64 = arith.truncf %57 : vector<2x32xf32> to vector<2x32xbf16>
    %c0_36 = arith.constant 0 : index
    %c0_37 = arith.constant 0 : index
    %65 = vector.load %arg11[%c0_36, %c0_37] : memref<32x4xbf16, #tpu.memory_space<vmem>>, vector<32x4xbf16>
    %cst_38 = arith.constant dense<0.000000e+00> : vector<2x4xf32>
    %66 = tpu.matmul %64, %65, %cst_38 {dimension_numbers = #tpu.dot_dimension_numbers<[1], [0], [0], [1], [0, 0, 1, 1], [], []>} : vector<2x32xbf16>, vector<32x4xbf16>, vector<2x4xf32> -> vector<2x4xf32>
    %c6 = arith.constant 6 : index
    %c0_39 = arith.constant 0 : index
    %67 = vector.load %arg3[%c6, %c0_39] : memref<12x128xf32, #tpu.memory_space<vmem>>, vector<1x4xf32>
    %68 = vector.broadcast %67 : vector<1x4xf32> to vector<2x4xf32>
    %69 = arith.addf %66, %68 : vector<2x4xf32>
    %cst_40 = arith.constant 5.000000e-01 : f32
    %70 = vector.broadcast %cst_40 : f32 to vector<2x4xf32>
    %71 = arith.mulf %69, %70 : vector<2x4xf32>
    %72 = math.exp %71 : vector<2x4xf32>
    %c0_41 = arith.constant 0 : index
    %c0_42 = arith.constant 0 : index
    %73 = vector.load %arg2[%c0_41, %c0_42] : memref<2x4xf32, #tpu.memory_space<vmem>>, vector<2x4xf32>
    %74 = arith.mulf %72, %73 : vector<2x4xf32>
    %75 = arith.addf %63, %74 : vector<2x4xf32>
    %76 = arith.truncf %75 : vector<2x4xf32> to vector<2x4xbf16>
    %c0_43 = arith.constant 0 : index
    %c0_44 = arith.constant 0 : index
    %77 = vector.load %arg12[%c0_43, %c0_44] : memref<4x32xbf16, #tpu.memory_space<vmem>>, vector<4x32xbf16>
    %cst_45 = arith.constant dense<0.000000e+00> : vector<2x32xf32>
    %78 = tpu.matmul %76, %77, %cst_45 {dimension_numbers = #tpu.dot_dimension_numbers<[1], [0], [0], [1], [0, 0, 1, 1], [], []>} : vector<2x4xbf16>, vector<4x32xbf16>, vector<2x32xf32> -> vector<2x32xf32>
    %c7 = arith.constant 7 : index
    %c0_46 = arith.constant 0 : index
    %79 = vector.load %arg3[%c7, %c0_46] : memref<12x128xf32, #tpu.memory_space<vmem>>, vector<1x32xf32>
    %80 = vector.broadcast %79 : vector<1x32xf32> to vector<2x32xf32>
    %81 = arith.addf %78, %80 : vector<2x32xf32>
    %cst_47 = arith.constant 0.000000e+00 : f32
    %82 = vector.broadcast %cst_47 : f32 to vector<2x32xf32>
    %83 = arith.cmpf oge, %81, %82 : vector<2x32xf32>
    %cst_48 = arith.constant 0.00999999977 : f32
    %84 = vector.broadcast %cst_48 : f32 to vector<2x32xf32>
    %85 = arith.mulf %84, %81 : vector<2x32xf32>
    %86 = arith.select %83, %81, %85 : vector<2x32xi1>, vector<2x32xf32>
    %87 = arith.truncf %86 : vector<2x32xf32> to vector<2x32xbf16>
    %c0_49 = arith.constant 0 : index
    %c0_50 = arith.constant 0 : index
    %88 = vector.load %arg13[%c0_49, %c0_50] : memref<32x32xbf16, #tpu.memory_space<vmem>>, vector<32x32xbf16>
    %cst_51 = arith.constant dense<0.000000e+00> : vector<2x32xf32>
    %89 = tpu.matmul %87, %88, %cst_51 {dimension_numbers = #tpu.dot_dimension_numbers<[1], [0], [0], [1], [0, 0, 1, 1], [], []>} : vector<2x32xbf16>, vector<32x32xbf16>, vector<2x32xf32> -> vector<2x32xf32>
    %c8 = arith.constant 8 : index
    %c0_52 = arith.constant 0 : index
    %90 = vector.load %arg3[%c8, %c0_52] : memref<12x128xf32, #tpu.memory_space<vmem>>, vector<1x32xf32>
    %91 = vector.broadcast %90 : vector<1x32xf32> to vector<2x32xf32>
    %92 = arith.addf %89, %91 : vector<2x32xf32>
    %cst_53 = arith.constant 0.000000e+00 : f32
    %93 = vector.broadcast %cst_53 : f32 to vector<2x32xf32>
    %94 = arith.cmpf oge, %92, %93 : vector<2x32xf32>
    %cst_54 = arith.constant 0.00999999977 : f32
    %95 = vector.broadcast %cst_54 : f32 to vector<2x32xf32>
    %96 = arith.mulf %95, %92 : vector<2x32xf32>
    %97 = arith.select %94, %92, %96 : vector<2x32xi1>, vector<2x32xf32>
    %98 = arith.truncf %97 : vector<2x32xf32> to vector<2x32xbf16>
    %99 = vector.shape_cast %98 : vector<2x32xbf16> to vector<1x2x32xbf16>
    %100 = vector.shape_cast %99 : vector<1x2x32xbf16> to vector<1x2x32xbf16>
    %101 = vector.broadcast %100 : vector<1x2x32xbf16> to vector<8x2x32xbf16>
    %c0_55 = arith.constant 0 : index
    %c0_56 = arith.constant 0 : index
    %c0_57 = arith.constant 0 : index
    %102 = vector.load %arg14[%c0_55, %c0_56, %c0_57] : memref<8x32x8xbf16, #tpu.memory_space<vmem>>, vector<8x32x8xbf16>
    "tpu.trace_start"() <{level = 10 : i32, message = "sbh,shf->sbf"}> : () -> ()
    %cst_58 = arith.constant dense<0.000000e+00> : vector<8x2x8xf32>
    %103 = tpu.matmul %101, %102, %cst_58 {dimension_numbers = #tpu.dot_dimension_numbers<[2], [1], [1], [2], [0, 0, 0, 1, 1, 2], [0], [0]>} : vector<8x2x32xbf16>, vector<8x32x8xbf16>, vector<8x2x8xf32> -> vector<8x2x8xf32>
    "tpu.trace_stop"() : () -> ()
    %c0_59 = arith.constant 0 : index
    %c0_60 = arith.constant 0 : index
    %c0_61 = arith.constant 0 : index
    %104 = vector.load %arg4[%c0_59, %c0_60, %c0_61] : memref<8x1x8xf32, #tpu.memory_space<vmem>>, vector<8x1x8xf32>
    %105 = vector.broadcast %104 : vector<8x1x8xf32> to vector<8x2x8xf32>
    %106 = arith.addf %103, %105 : vector<8x2x8xf32>
    %cst_62 = arith.constant 0.000000e+00 : f32
    %107 = vector.broadcast %cst_62 : f32 to vector<8x2x8xf32>
    %108 = arith.cmpf oge, %106, %107 : vector<8x2x8xf32>
    %cst_63 = arith.constant 0.00999999977 : f32
    %109 = vector.broadcast %cst_63 : f32 to vector<8x2x8xf32>
    %110 = arith.mulf %109, %106 : vector<8x2x8xf32>
    %111 = arith.select %108, %106, %110 : vector<8x2x8xi1>, vector<8x2x8xf32>
    %c0_64 = arith.constant 0 : index
    %c0_65 = arith.constant 0 : index
    %112 = vector.load %arg15[%c0_64, %c0_65] : memref<8x8xbf16, #tpu.memory_space<vmem>>, vector<8x8xbf16>
    %113 = vector.shape_cast %112 : vector<8x8xbf16> to vector<1x8x8xbf16>
    %114 = vector.shape_cast %113 : vector<1x8x8xbf16> to vector<1x8x8xbf16>
    %115 = vector.broadcast %114 : vector<1x8x8xbf16> to vector<8x8x8xbf16>
    %116 = arith.truncf %111 : vector<8x2x8xf32> to vector<8x2x8xbf16>
    "tpu.trace_start"() <{level = 10 : i32, message = "sbf,sfg->sbg"}> : () -> ()
    %cst_66 = arith.constant dense<0.000000e+00> : vector<8x2x8xf32>
    %117 = tpu.matmul %116, %115, %cst_66 {dimension_numbers = #tpu.dot_dimension_numbers<[2], [1], [1], [2], [0, 0, 0, 1, 1, 2], [0], [0]>} : vector<8x2x8xbf16>, vector<8x8x8xbf16>, vector<8x2x8xf32> -> vector<8x2x8xf32>
    "tpu.trace_stop"() : () -> ()
    %c9 = arith.constant 9 : index
    %c0_67 = arith.constant 0 : index
    %118 = vector.load %arg3[%c9, %c0_67] : memref<12x128xf32, #tpu.memory_space<vmem>>, vector<1x8xf32>
    %119 = vector.shape_cast %118 : vector<1x8xf32> to vector<1x1x8xf32>
    %120 = vector.broadcast %119 : vector<1x1x8xf32> to vector<8x2x8xf32>
    %121 = arith.addf %117, %120 : vector<8x2x8xf32>
    %cst_68 = arith.constant 0.000000e+00 : f32
    %122 = vector.broadcast %cst_68 : f32 to vector<8x2x8xf32>
    %123 = arith.cmpf oge, %121, %122 : vector<8x2x8xf32>
    %cst_69 = arith.constant 0.00999999977 : f32
    %124 = vector.broadcast %cst_69 : f32 to vector<8x2x8xf32>
    %125 = arith.mulf %124, %121 : vector<8x2x8xf32>
    %126 = arith.select %123, %121, %125 : vector<8x2x8xi1>, vector<8x2x8xf32>
    %c0_70 = arith.constant 0 : index
    %c0_71 = arith.constant 0 : index
    %127 = vector.load %arg16[%c0_70, %c0_71] : memref<8x8xbf16, #tpu.memory_space<vmem>>, vector<8x8xbf16>
    %128 = vector.shape_cast %127 : vector<8x8xbf16> to vector<1x8x8xbf16>
    %129 = vector.shape_cast %128 : vector<1x8x8xbf16> to vector<1x8x8xbf16>
    %130 = vector.broadcast %129 : vector<1x8x8xbf16> to vector<8x8x8xbf16>
    %131 = arith.truncf %126 : vector<8x2x8xf32> to vector<8x2x8xbf16>
    "tpu.trace_start"() <{level = 10 : i32, message = "sbf,sfg->sbg"}> : () -> ()
    %cst_72 = arith.constant dense<0.000000e+00> : vector<8x2x8xf32>
    %132 = tpu.matmul %131, %130, %cst_72 {dimension_numbers = #tpu.dot_dimension_numbers<[2], [1], [1], [2], [0, 0, 0, 1, 1, 2], [0], [0]>} : vector<8x2x8xbf16>, vector<8x8x8xbf16>, vector<8x2x8xf32> -> vector<8x2x8xf32>
    "tpu.trace_stop"() : () -> ()
    %c10 = arith.constant 10 : index
    %c0_73 = arith.constant 0 : index
    %133 = vector.load %arg3[%c10, %c0_73] : memref<12x128xf32, #tpu.memory_space<vmem>>, vector<1x8xf32>
    %134 = vector.shape_cast %133 : vector<1x8xf32> to vector<1x1x8xf32>
    %135 = vector.broadcast %134 : vector<1x1x8xf32> to vector<8x2x8xf32>
    %136 = arith.addf %132, %135 : vector<8x2x8xf32>
    %cst_74 = arith.constant 0.000000e+00 : f32
    %137 = vector.broadcast %cst_74 : f32 to vector<8x2x8xf32>
    %138 = arith.cmpf oge, %136, %137 : vector<8x2x8xf32>
    %cst_75 = arith.constant 0.00999999977 : f32
    %139 = vector.broadcast %cst_75 : f32 to vector<8x2x8xf32>
    %140 = arith.mulf %139, %136 : vector<8x2x8xf32>
    %141 = arith.select %138, %136, %140 : vector<8x2x8xi1>, vector<8x2x8xf32>
    %c0_76 = arith.constant 0 : index
    %c0_77 = arith.constant 0 : index
    %142 = vector.load %arg17[%c0_76, %c0_77] : memref<8x8xbf16, #tpu.memory_space<vmem>>, vector<8x8xbf16>
    %143 = vector.shape_cast %142 : vector<8x8xbf16> to vector<1x8x8xbf16>
    %144 = vector.shape_cast %143 : vector<1x8x8xbf16> to vector<1x8x8xbf16>
    %145 = vector.broadcast %144 : vector<1x8x8xbf16> to vector<8x8x8xbf16>
    %146 = arith.truncf %141 : vector<8x2x8xf32> to vector<8x2x8xbf16>
    "tpu.trace_start"() <{level = 10 : i32, message = "sbf,sfg->sbg"}> : () -> ()
    %cst_78 = arith.constant dense<0.000000e+00> : vector<8x2x8xf32>
    %147 = tpu.matmul %146, %145, %cst_78 {dimension_numbers = #tpu.dot_dimension_numbers<[2], [1], [1], [2], [0, 0, 0, 1, 1, 2], [0], [0]>} : vector<8x2x8xbf16>, vector<8x8x8xbf16>, vector<8x2x8xf32> -> vector<8x2x8xf32>
    "tpu.trace_stop"() : () -> ()
    %c11 = arith.constant 11 : index
    %c0_79 = arith.constant 0 : index
    %148 = vector.load %arg3[%c11, %c0_79] : memref<12x128xf32, #tpu.memory_space<vmem>>, vector<1x8xf32>
    %149 = vector.shape_cast %148 : vector<1x8xf32> to vector<1x1x8xf32>
    %150 = vector.broadcast %149 : vector<1x1x8xf32> to vector<8x2x8xf32>
    %151 = arith.addf %147, %150 : vector<8x2x8xf32>
    %cst_80 = arith.constant 0.000000e+00 : f32
    %152 = vector.broadcast %cst_80 : f32 to vector<8x2x8xf32>
    %153 = arith.cmpf oge, %151, %152 : vector<8x2x8xf32>
    %cst_81 = arith.constant 0.00999999977 : f32
    %154 = vector.broadcast %cst_81 : f32 to vector<8x2x8xf32>
    %155 = arith.mulf %154, %151 : vector<8x2x8xf32>
    %156 = arith.select %153, %151, %155 : vector<8x2x8xi1>, vector<8x2x8xf32>
    %c0_82 = arith.constant 0 : index
    %c0_83 = arith.constant 0 : index
    %c0_84 = arith.constant 0 : index
    %157 = vector.load %arg18[%c0_82, %c0_83, %c0_84] : memref<3x2x4xf32, #tpu.memory_space<vmem>>, vector<1x2x4xf32>
    %158 = vector.shape_cast %157 : vector<1x2x4xf32> to vector<2x4xf32>
    %159 = vector.shape_cast %75 : vector<2x4xf32> to vector<1x2x4xf32>
    tpu.vector_store %arg18[%c0_82, %c0_83, %c0_84], %159 {strides = array<i32>} : memref<3x2x4xf32, #tpu.memory_space<vmem>>, vector<1x2x4xf32>,
    %c1_85 = arith.constant 1 : index
    %c0_86 = arith.constant 0 : index
    %c0_87 = arith.constant 0 : index
    %160 = vector.load %arg18[%c1_85, %c0_86, %c0_87] : memref<3x2x4xf32, #tpu.memory_space<vmem>>, vector<1x2x4xf32>
    %161 = vector.shape_cast %160 : vector<1x2x4xf32> to vector<2x4xf32>
    %162 = vector.shape_cast %63 : vector<2x4xf32> to vector<1x2x4xf32>
    tpu.vector_store %arg18[%c1_85, %c0_86, %c0_87], %162 {strides = array<i32>} : memref<3x2x4xf32, #tpu.memory_space<vmem>>, vector<1x2x4xf32>,
    %c2_88 = arith.constant 2 : index
    %c0_89 = arith.constant 0 : index
    %c0_90 = arith.constant 0 : index
    %163 = vector.load %arg18[%c2_88, %c0_89, %c0_90] : memref<3x2x4xf32, #tpu.memory_space<vmem>>, vector<1x2x4xf32>
    %164 = vector.shape_cast %163 : vector<1x2x4xf32> to vector<2x4xf32>
    %165 = vector.shape_cast %69 : vector<2x4xf32> to vector<1x2x4xf32>
    tpu.vector_store %arg18[%c2_88, %c0_89, %c0_90], %165 {strides = array<i32>} : memref<3x2x4xf32, #tpu.memory_space<vmem>>, vector<1x2x4xf32>,
    %c0_91 = arith.constant 0 : index
    %c0_92 = arith.constant 0 : index
    %c0_93 = arith.constant 0 : index
    %166 = vector.load %arg19[%c0_91, %c0_92, %c0_93] : memref<8x2x8xf32, #tpu.memory_space<vmem>>, vector<8x2x8xf32>
    tpu.vector_store %arg19[%c0_91, %c0_92, %c0_93], %156 {strides = array<i32>} : memref<8x2x8xf32, #tpu.memory_space<vmem>>, vector<8x2x8xf32>,
    return
  }
  func.func @transform_0(%arg0: i32) -> (i32, i32) {
    %c0_i32 = arith.constant 0 : i32
    %c0_i32_0 = arith.constant 0 : i32
    return %arg0, %c0_i32 : i32, i32
  }
  func.func @transform_1(%arg0: i32) -> (i32, i32) {
    %c0_i32 = arith.constant 0 : i32
    %c0_i32_0 = arith.constant 0 : i32
    return %arg0, %c0_i32 : i32, i32
  }
  func.func @transform_2(%arg0: i32) -> (i32, i32) {
    %c0_i32 = arith.constant 0 : i32
    %c0_i32_0 = arith.constant 0 : i32
    %c0_i32_1 = arith.constant 0 : i32
    return %c0_i32, %c0_i32_0 : i32, i32
  }
  func.func @transform_3(%arg0: i32) -> (i32, i32, i32) {
    %c0_i32 = arith.constant 0 : i32
    %c0_i32_0 = arith.constant 0 : i32
    %c0_i32_1 = arith.constant 0 : i32
    %c0_i32_2 = arith.constant 0 : i32
    return %c0_i32, %c0_i32_0, %c0_i32_1 : i32, i32, i32
  }
  func.func @transform_4(%arg0: i32) -> (i32, i32) {
    %c0_i32 = arith.constant 0 : i32
    %c0_i32_0 = arith.constant 0 : i32
    %c0_i32_1 = arith.constant 0 : i32
    return %c0_i32, %c0_i32_0 : i32, i32
  }
  func.func @transform_5(%arg0: i32) -> (i32, i32) {
    %c0_i32 = arith.constant 0 : i32
    %c0_i32_0 = arith.constant 0 : i32
    %c0_i32_1 = arith.constant 0 : i32
    return %c0_i32, %c0_i32_0 : i32, i32
  }
  func.func @transform_6(%arg0: i32) -> (i32, i32) {
    %c0_i32 = arith.constant 0 : i32
    %c0_i32_0 = arith.constant 0 : i32
    %c0_i32_1 = arith.constant 0 : i32
    return %c0_i32, %c0_i32_0 : i32, i32
  }
  func.func @transform_7(%arg0: i32) -> (i32, i32) {
    %c0_i32 = arith.constant 0 : i32
    %c0_i32_0 = arith.constant 0 : i32
    %c0_i32_1 = arith.constant 0 : i32
    return %c0_i32, %c0_i32_0 : i32, i32
  }
  func.func @transform_8(%arg0: i32) -> (i32, i32) {
    %c0_i32 = arith.constant 0 : i32
    %c0_i32_0 = arith.constant 0 : i32
    %c0_i32_1 = arith.constant 0 : i32
    return %c0_i32, %c0_i32_0 : i32, i32
  }
  func.func @transform_9(%arg0: i32) -> (i32, i32) {
    %c0_i32 = arith.constant 0 : i32
    %c0_i32_0 = arith.constant 0 : i32
    %c0_i32_1 = arith.constant 0 : i32
    return %c0_i32, %c0_i32_0 : i32, i32
  }
  func.func @transform_10(%arg0: i32) -> (i32, i32) {
    %c0_i32 = arith.constant 0 : i32
    %c0_i32_0 = arith.constant 0 : i32
    %c0_i32_1 = arith.constant 0 : i32
    return %c0_i32, %c0_i32_0 : i32, i32
  }
  func.func @transform_11(%arg0: i32) -> (i32, i32) {
    %c0_i32 = arith.constant 0 : i32
    %c0_i32_0 = arith.constant 0 : i32
    %c0_i32_1 = arith.constant 0 : i32
    return %c0_i32, %c0_i32_0 : i32, i32
  }
  func.func @transform_12(%arg0: i32) -> (i32, i32) {
    %c0_i32 = arith.constant 0 : i32
    %c0_i32_0 = arith.constant 0 : i32
    %c0_i32_1 = arith.constant 0 : i32
    return %c0_i32, %c0_i32_0 : i32, i32
  }
  func.func @transform_13(%arg0: i32) -> (i32, i32, i32) {
    %c0_i32 = arith.constant 0 : i32
    %c0_i32_0 = arith.constant 0 : i32
    %c0_i32_1 = arith.constant 0 : i32
    %c0_i32_2 = arith.constant 0 : i32
    return %c0_i32, %c0_i32_0, %c0_i32_1 : i32, i32, i32
  }
  func.func @transform_14(%arg0: i32) -> (i32, i32) {
    %c0_i32 = arith.constant 0 : i32
    %c0_i32_0 = arith.constant 0 : i32
    %c0_i32_1 = arith.constant 0 : i32
    return %c0_i32, %c0_i32_0 : i32, i32
  }
  func.func @transform_15(%arg0: i32) -> (i32, i32) {
    %c0_i32 = arith.constant 0 : i32
    %c0_i32_0 = arith.constant 0 : i32
    %c0_i32_1 = arith.constant 0 : i32
    return %c0_i32, %c0_i32_0 : i32, i32
  }
  func.func @transform_16(%arg0: i32) -> (i32, i32) {
    %c0_i32 = arith.constant 0 : i32
    %c0_i32_0 = arith.constant 0 : i32
    %c0_i32_1 = arith.constant 0 : i32
    return %c0_i32, %c0_i32_0 : i32, i32
  }
  func.func @transform_17(%arg0: i32) -> (i32, i32, i32) {
    %c0_i32 = arith.constant 0 : i32
    %c0_i32_0 = arith.constant 0 : i32
    %c0_i32_1 = arith.constant 0 : i32
    return %c0_i32, %arg0, %c0_i32_0 : i32, i32, i32
  }
  func.func @transform_18(%arg0: i32) -> (i32, i32, i32) {
    %c0_i32 = arith.constant 0 : i32
    %c0_i32_0 = arith.constant 0 : i32
    %c0_i32_1 = arith.constant 0 : i32
    return %c0_i32, %arg0, %c0_i32_0 : i32, i32, i32
  }
}

</mosaic_0001>

<llo_original>
// kernel: deepset_vae_forward.1
$region0: #{deepset_vae_forward.1}
  #allocation0 [shape = 'u32[]', space=smem, size = 0x4, offset = 0x4, fixed_abs, tag = 'smem constant byte address 0x4 - core index']
  #allocation1 [shape = 'u32[72,128]{1,0:T(1,128)}', space=vmem, size = 0x9000, scoped, tag = 'internal scratch']
  %s0 = inlined_call_operand.vmem [shape: f32[16,8], index: 0, kind: input, shape index: {}]
  %s1 = inlined_call_operand.vmem [shape: f32[2,4], index: 1, kind: input, shape index: {}]
  %s2 = inlined_call_operand.vmem [shape: f32[12,128], index: 2, kind: input, shape index: {}]
  %s3 = inlined_call_operand.vmem [shape: f32[8,1,8], index: 3, kind: input, shape index: {}]
  %s4 = inlined_call_operand.vmem [shape: bf16[8,16], index: 4, kind: input, shape index: {}]
  %s5 = inlined_call_operand.vmem [shape: bf16[16,16], index: 5, kind: input, shape index: {}]
  %s6 = inlined_call_operand.vmem [shape: bf16[16,32], index: 6, kind: input, shape index: {}]
  %s7 = inlined_call_operand.vmem [shape: bf16[32,32], index: 7, kind: input, shape index: {}]
  %s8 = inlined_call_operand.vmem [shape: bf16[32,32], index: 8, kind: input, shape index: {}]
  %s9 = inlined_call_operand.vmem [shape: bf16[32,4], index: 9, kind: input, shape index: {}]
  %s10 = inlined_call_operand.vmem [shape: bf16[32,4], index: 10, kind: input, shape index: {}]
  %s11 = inlined_call_operand.vmem [shape: bf16[4,32], index: 11, kind: input, shape index: {}]
  %s12 = inlined_call_operand.vmem [shape: bf16[32,32], index: 12, kind: input, shape index: {}]
  %s13 = inlined_call_operand.vmem [shape: bf16[8,32,8], index: 13, kind: input, shape index: {}]
  %s14 = inlined_call_operand.vmem [shape: bf16[8,8], index: 14, kind: input, shape index: {}]
  %s15 = inlined_call_operand.vmem [shape: bf16[8,8], index: 15, kind: input, shape index: {}]
  %s16 = inlined_call_operand.vmem [shape: bf16[8,8], index: 16, kind: input, shape index: {}]
  %s17 = inlined_call_operand.vmem [shape: f32[3,2,4], index: 17, kind: output, shape index: {0}]
  %s18 = inlined_call_operand.vmem [shape: f32[8,2,8], index: 18, kind: output, shape index: {1}]
  %19 = xla_tuple %s17, %s18
  %s20 = sld [smem:[#allocation0]]
  $region86: #{deepset_vae_forward.1} parent=0
    _
  %s22 = ssub.s32 1, %s20
  %s23 = scalar_select 0, %s22, %s20
  // Predicated region
  $region2: #{deepset_vae_forward.1} parent=0 // pred_check
    _
  $region3: #{deepset_vae_forward.1} parent=0 // pred_check_branch
    %25 = sbr.rel (0) target = $region5
  $region4: #{deepset_vae_forward.1} parent=0 // pred_region
    _
  $region5: #{deepset_vae_forward.1} parent=0 // pred_fallthru
    _
  // Predicated region
  $region6: #{deepset_vae_forward.1} parent=0 // pred_check
    _
  $region7: #{deepset_vae_forward.1} parent=0 // pred_check_branch
    %27 = sbr.rel (0) target = $region9
  $region8: #{deepset_vae_forward.1} parent=0 // pred_region
    _
  $region9: #{deepset_vae_forward.1} parent=0 // pred_fallthru
    _
  // Predicated region
  $region10: #{deepset_vae_forward.1} parent=0 // pred_check
    _
  $region11: #{deepset_vae_forward.1} parent=0 // pred_check_branch
    %29 = sbr.rel (0) target = $region13
  $region12: #{deepset_vae_forward.1} parent=0 // pred_region
    _
  $region13: #{deepset_vae_forward.1} parent=0 // pred_fallthru
    _
  // Predicated region
  $region14: #{deepset_vae_forward.1} parent=0 // pred_check
    _
  $region15: #{deepset_vae_forward.1} parent=0 // pred_check_branch
    %31 = sbr.rel (0) target = $region17
  $region16: #{deepset_vae_forward.1} parent=0 // pred_region
    _
  $region17: #{deepset_vae_forward.1} parent=0 // pred_fallthru
    _
  // Predicated region
  $region18: #{deepset_vae_forward.1} parent=0 // pred_check
    _
  $region19: #{deepset_vae_forward.1} parent=0 // pred_check_branch
    %33 = sbr.rel (0) target = $region21
  $region20: #{deepset_vae_forward.1} parent=0 // pred_region
    _
  $region21: #{deepset_vae_forward.1} parent=0 // pred_fallthru
    _
  // Predicated region
  $region22: #{deepset_vae_forward.1} parent=0 // pred_check
    _
  $region23: #{deepset_vae_forward.1} parent=0 // pred_check_branch
    %35 = sbr.rel (0) target = $region25
  $region24: #{deepset_vae_forward.1} parent=0 // pred_region
    _
  $region25: #{deepset_vae_forward.1} parent=0 // pred_fallthru
    _
  // Predicated region
  $region26: #{deepset_vae_forward.1} parent=0 // pred_check
    _
  $region27: #{deepset_vae_forward.1} parent=0 // pred_check_branch
    %37 = sbr.rel (0) target = $region29
  $region28: #{deepset_vae_forward.1} parent=0 // pred_region
    _
  $region29: #{deepset_vae_forward.1} parent=0 // pred_fallthru
    _
  // Predicated region
  $region30: #{deepset_vae_forward.1} parent=0 // pred_check
    _
  $region31: #{deepset_vae_forward.1} parent=0 // pred_check_branch
    %39 = sbr.rel (0) target = $region33
  $region32: #{deepset_vae_forward.1} parent=0 // pred_region
    _
  $region33: #{deepset_vae_forward.1} parent=0 // pred_fallthru
    _
  // Predicated region
  $region34: #{deepset_vae_forward.1} parent=0 // pred_check
    _
  $region35: #{deepset_vae_forward.1} parent=0 // pred_check_branch
    %41 = sbr.rel (0) target = $region37
  $region36: #{deepset_vae_forward.1} parent=0 // pred_region
    _
  $region37: #{deepset_vae_forward.1} parent=0 // pred_fallthru
    _
  // Predicated region
  $region38: #{deepset_vae_forward.1} parent=0 // pred_check
    _
  $region39: #{deepset_vae_forward.1} parent=0 // pred_check_branch
    %43 = sbr.rel (0) target = $region41
  $region40: #{deepset_vae_forward.1} parent=0 // pred_region
    _
  $region41: #{deepset_vae_forward.1} parent=0 // pred_fallthru
    _
  // Predicated region
  $region42: #{deepset_vae_forward.1} parent=0 // pred_check
    _
  $region43: #{deepset_vae_forward.1} parent=0 // pred_check_branch
    %45 = sbr.rel (0) target = $region45
  $region44: #{deepset_vae_forward.1} parent=0 // pred_region
    _
  $region45: #{deepset_vae_forward.1} parent=0 // pred_fallthru
    _
  // Predicated region
  $region46: #{deepset_vae_forward.1} parent=0 // pred_check
    _
  $region47: #{deepset_vae_forward.1} parent=0 // pred_check_branch
    %47 = sbr.rel (0) target = $region49
  $region48: #{deepset_vae_forward.1} parent=0 // pred_region
    _
  $region49: #{deepset_vae_forward.1} parent=0 // pred_fallthru
    _
  // Predicated region
  $region50: #{deepset_vae_forward.1} parent=0 // pred_check
    _
  $region51: #{deepset_vae_forward.1} parent=0 // pred_check_branch
    %49 = sbr.rel (0) target = $region53
  $region52: #{deepset_vae_forward.1} parent=0 // pred_region
    _
  $region53: #{deepset_vae_forward.1} parent=0 // pred_fallthru
    _
  // Predicated region
  $region54: #{deepset_vae_forward.1} parent=0 // pred_check
    _
  $region55: #{deepset_vae_forward.1} parent=0 // pred_check_branch
    %51 = sbr.rel (0) target = $region57
  $region56: #{deepset_vae_forward.1} parent=0 // pred_region
    _
  $region57: #{deepset_vae_forward.1} parent=0 // pred_fallthru
    _
  // Predicated region
  $region58: #{deepset_vae_forward.1} parent=0 // pred_check
    _
  $region59: #{deepset_vae_forward.1} parent=0 // pred_check_branch
    %53 = sbr.rel (0) target = $region61
  $region60: #{deepset_vae_forward.1} parent=0 // pred_region
    _
  $region61: #{deepset_vae_forward.1} parent=0 // pred_fallthru
    _
  // Predicated region
  $region62: #{deepset_vae_forward.1} parent=0 // pred_check
    _
  $region63: #{deepset_vae_forward.1} parent=0 // pred_check_branch
    %55 = sbr.rel (0) target = $region65
  $region64: #{deepset_vae_forward.1} parent=0 // pred_region
    _
  $region65: #{deepset_vae_forward.1} parent=0 // pred_fallthru
    _
  // Predicated region
  $region66: #{deepset_vae_forward.1} parent=0 // pred_check
    _
  $region67: #{deepset_vae_forward.1} parent=0 // pred_check_branch
    %57 = sbr.rel (0) target = $region69
  $region68: #{deepset_vae_forward.1} parent=0 // pred_region
    _
  $region69: #{deepset_vae_forward.1} parent=0 // pred_fallthru
    _
  %v59 = vld [vmem:[%s0] sm:$0xff]
  %v60 = vld [vmem:[%s0 + $0x8] sm:$0xff]
  %v61 = vpack.c.bf16 %v60, %v59
  %v62 = vld [vmem:[%s4] sm:$0xf]
  %v63 = vld [vmem:[%s2] sm:$0x1]
  %v64 = vperm.slane %v63, 0
  %vm65 = vcmask 64512
  %v67 = vsel %vm65, %v61, 0
  %vm69 = vcmask 1043456
  %v71 = vsel %vm69, %v62, 0
  %73 = vmatpush.bf16.msra.mxu0 0
  %74 = vmatpush.bf16.msra.mxu0 0
  %75 = vmatpush.bf16.msra.mxu0 0
  %76 = vmatpush.bf16.msra.mxu0 0
  %77 = vmatpush.bf16.msra.mxu0 0
  %78 = vmatpush.bf16.msra.mxu0 0
  %79 = vmatpush.bf16.msra.mxu0 0
  %80 = vmatpush.bf16.msra.mxu0 %v71
  %81 = vmatmul.bf16.gmra.mxu0 %v67
  %v82 = vpop.f32.mrf.mxu0
  %v83 = vadd.f32 %v64, %v82
  %v84 = vpop.f32.mrf.mxu0
  %v85 = vadd.f32 %v64, %v84
  %86 = vdwg.mxu0
  %vm87 = vcmp.ge.f32.partialorder %v83, 0.0
  %vm88 = vcmp.ge.f32.partialorder %v85, 0.0
  %v89 = vmul.f32 %v83, 0.01
  %v90 = vmul.f32 %v85, 0.01
  %v91 = vsel %vm87, %v83, %v89
  %v92 = vsel %vm88, %v85, %v90
  %v93 = vpack.c.bf16 %v92, %v91
  %v94 = vld [vmem:[%s5] sm:$0xf]
  %v95 = vld [vmem:[%s5 + $0x4] sm:$0xf]
  %v96 = vld [vmem:[%s2 + $0x1] sm:$0x1]
  %v97 = vperm.slane %v96, 0
  %v100 = vunpack.c.l.b16 %v94
  %v101 = vunpack.c.l.b16 %v95
  %v102 = vpack.c.b16 %v101, %v100
  %vm104 = vcmask 130048
  %v106 = vsel %vm104, %v93, 0
  %108 = vmatpush.bf16.msra.mxu0 0
  %109 = vmatpush.bf16.msra.mxu0 0
  %110 = vmatpush.bf16.msra.mxu0 0
  %111 = vmatpush.bf16.msra.mxu0 0
  %112 = vmatpush.bf16.msra.mxu0 0
  %113 = vmatpush.bf16.msra.mxu0 0
  %114 = vmatpush.bf16.msra.mxu0 0
  %115 = vmatpush.bf16.msra.mxu0 %v102
  %116 = vmatmul.bf16.gmra.mxu0 %v106
  %v117 = vpop.f32.mrf.mxu0
  %v118 = vadd.f32 %v97, %v117
  %v119 = vpop.f32.mrf.mxu0
  %v120 = vadd.f32 %v97, %v119
  %121 = vdwg.mxu0
  %vm122 = vcmp.ge.f32.partialorder %v118, 0.0
  %vm123 = vcmp.ge.f32.partialorder %v120, 0.0
  %v124 = vmul.f32 %v118, 0.01
  %v125 = vmul.f32 %v120, 0.01
  %v126 = vsel %vm122, %v118, %v124
  %v127 = vsel %vm123, %v120, %v125
  %v128 = vpack.c.bf16 %v127, %v126
  %v129 = vld [vmem:[%s6] sm:$0xf]
  %v130 = vld [vmem:[%s6 + $0x4] sm:$0xf]
  %v131 = vld [vmem:[%s2 + $0x2] sm:$0x1]
  %v132 = vperm.slane %v131, 0
  %v135 = vunpack.c.l.b16 %v129
  %v136 = vunpack.c.l.b16 %v130
  %v137 = vpack.c.b16 %v136, %v135
  %v140 = vsel %vm104, %v128, 0
  %142 = vmatpush.bf16.msra.mxu0 0
  %143 = vmatpush.bf16.msra.mxu0 0
  %144 = vmatpush.bf16.msra.mxu0 0
  %145 = vmatpush.bf16.msra.mxu0 0
  %146 = vmatpush.bf16.msra.mxu0 0
  %147 = vmatpush.bf16.msra.mxu0 0
  %148 = vmatpush.bf16.msra.mxu0 0
  %149 = vmatpush.bf16.msra.mxu0 %v137
  %150 = vmatmul.bf16.gmra.mxu0 %v140
  %v151 = vpop.f32.mrf.mxu0
  %v152 = vadd.f32 %v132, %v151
  %v153 = vpop.f32.mrf.mxu0
  %v154 = vadd.f32 %v132, %v153
  %155 = vdwg.mxu0
  %vm156 = vcmp.ge.f32.partialorder %v152, 0.0
  %vm157 = vcmp.ge.f32.partialorder %v154, 0.0
  %v158 = vmul.f32 %v152, 0.01
  %v159 = vmul.f32 %v154, 0.01
  %v160 = vsel %vm156, %v152, %v158
  %v161 = vsel %vm157, %v154, %v159
  %vm162 = vcmask 261120
  %v163 = vsel %vm162, %v160, 0.0
  %v164 = vrot.slane %v163, 4
  %v165 = vadd.f32 %v163, %v164
  %v166 = vrot.slane %v165, 2
  %v167 = vadd.f32 %v165, %v166
  %v168 = vrot.slane %v167, 1
  %v169 = vadd.f32 %v167, %v168
  %v170 = vsel %vm162, %v161, 0.0
  %v171 = vrot.slane %v170, 4
  %v172 = vadd.f32 %v170, %v171
  %v173 = vrot.slane %v172, 2
  %v174 = vadd.f32 %v172, %v173
  %v175 = vrot.slane %v174, 1
  %v176 = vadd.f32 %v174, %v175
  %v177 = vpack.c.bf16 %v169, %v169
  %v178 = vpack.c.bf16 %v176, %v176
  %v179 = vld [vmem:[%s7] sm:$0xf]
  %v180 = vld [vmem:[%s7 + $0x4] sm:$0xf]
  %v181 = vld [vmem:[%s7 + $0x8] sm:$0xf]
  %v182 = vld [vmem:[%s7 + $0xc] sm:$0xf]
  %v183 = vld [vmem:[%s2 + $0x3] sm:$0x1]
  %v184 = vperm.slane %v183, 0
  %v187 = vunpack.c.l.b16 %v177
  %v188 = vunpack.c.l.b16 %v178
  %vm189 = vcmask 1041409
  %v190 = vsel %vm189, %v188, %v187
  %v191 = vpack.c.b16 %v190, %v190
  %v196 = vunpack.c.l.b16 %v179
  %v197 = vunpack.c.l.b16 %v180
  %v198 = vunpack.c.l.b16 %v181
  %v199 = vunpack.c.l.b16 %v182
  %v200 = vpack.c.b16 %v197, %v196
  %v201 = vpack.c.b16 %v199, %v198
  %v205 = vsel %vm162, %v191, 0
  %207 = vmatpush.bf16.msra.mxu0 0
  %208 = vmatpush.bf16.msra.mxu0 0
  %209 = vmatpush.bf16.msra.mxu0 0
  %210 = vmatpush.bf16.msra.mxu0 0
  %211 = vmatpush.bf16.msra.mxu0 0
  %212 = vmatpush.bf16.msra.mxu0 0
  %213 = vmatpush.bf16.msra.mxu0 %v201
  %214 = vmatpush.bf16.msra.mxu0 %v200
  %215 = vmatmul.bf16.gmra.mxu0 %v205
  %v216 = vpop.f32.mrf.mxu0
  %v217 = vadd.f32 %v184, %v216
  %v218 = vpop.f32.mrf.mxu0
  %219 = vdwg.mxu0
  %vm220 = vcmp.ge.f32.partialorder %v217, 0.0
  %v221 = vmul.f32 %v217, 0.01
  %v222 = vsel %vm220, %v217, %v221
  %v223 = vpack.c.bf16 %v222, %v222
  %v224 = vld [vmem:[%s8] sm:$0xf]
  %v225 = vld [vmem:[%s8 + $0x4] sm:$0xf]
  %v226 = vld [vmem:[%s8 + $0x8] sm:$0xf]
  %v227 = vld [vmem:[%s8 + $0xc] sm:$0xf]
  %v228 = vld [vmem:[%s2 + $0x4] sm:$0x1]
  %v229 = vperm.slane %v228, 0
  %v234 = vunpack.c.l.b16 %v224
  %v235 = vunpack.c.l.b16 %v225
  %v236 = vunpack.c.l.b16 %v226
  %v237 = vunpack.c.l.b16 %v227
  %v238 = vpack.c.b16 %v235, %v234
  %v239 = vpack.c.b16 %v237, %v236
  %v243 = vsel %vm162, %v223, 0
  %245 = vmatpush.bf16.msra.mxu0 0
  %246 = vmatpush.bf16.msra.mxu0 0
  %247 = vmatpush.bf16.msra.mxu0 0
  %248 = vmatpush.bf16.msra.mxu0 0
  %249 = vmatpush.bf16.msra.mxu0 0
  %250 = vmatpush.bf16.msra.mxu0 0
  %251 = vmatpush.bf16.msra.mxu0 %v239
  %252 = vmatpush.bf16.msra.mxu0 %v238
  %253 = vmatmul.bf16.gmra.mxu0 %v243
  %v254 = vpop.f32.mrf.mxu0
  %v255 = vadd.f32 %v229, %v254
  %v256 = vpop.f32.mrf.mxu0
  %257 = vdwg.mxu0
  %vm258 = vcmp.ge.f32.partialorder %v255, 0.0
  %v259 = vmul.f32 %v255, 0.01
  %v260 = vsel %vm258, %v255, %v259
  %v261 = vpack.c.bf16 %v260, %v260
  %v262 = vld [vmem:[%s9] sm:$0xf]
  %v263 = vld [vmem:[%s9 + $0x4] sm:$0xf]
  %v264 = vld [vmem:[%s9 + $0x8] sm:$0xf]
  %v265 = vld [vmem:[%s9 + $0xc] sm:$0xf]
  %v266 = vld [vmem:[%s2 + $0x5] sm:$0x1]
  %v267 = vperm.slane %v266, 0
  %v272 = vunpack.c.l.b16 %v262
  %v273 = vunpack.c.l.b16 %v263
  %v274 = vunpack.c.l.b16 %v264
  %v275 = vunpack.c.l.b16 %v265
  %v276 = vpack.c.b16 %v273, %v272
  %v277 = vpack.c.b16 %v275, %v274
  %v281 = vsel %vm162, %v261, 0
  %283 = vmatpush.bf16.msra.mxu0 0
  %284 = vmatpush.bf16.msra.mxu0 0
  %285 = vmatpush.bf16.msra.mxu0 0
  %286 = vmatpush.bf16.msra.mxu0 0
  %287 = vmatpush.bf16.msra.mxu0 0
  %288 = vmatpush.bf16.msra.mxu0 0
  %289 = vmatpush.bf16.msra.mxu0 %v277
  %290 = vmatpush.bf16.msra.mxu0 %v276
  %291 = vmatmul.bf16.gmra.mxu0 %v281
  %v292 = vpop.f32.mrf.mxu0
  %v293 = vadd.f32 %v267, %v292
  %v294 = vpop.f32.mrf.mxu0
  %295 = vdwg.mxu0
  %v296 = vld [vmem:[%s10] sm:$0xf]
  %v297 = vld [vmem:[%s10 + $0x4] sm:$0xf]
  %v298 = vld [vmem:[%s10 + $0x8] sm:$0xf]
  %v299 = vld [vmem:[%s10 + $0xc] sm:$0xf]
  %v300 = vld [vmem:[%s2 + $0x6] sm:$0x1]
  %v301 = vperm.slane %v300, 0
  %v306 = vunpack.c.l.b16 %v296
  %v307 = vunpack.c.l.b16 %v297
  %v308 = vunpack.c.l.b16 %v298
  %v309 = vunpack.c.l.b16 %v299
  %v310 = vpack.c.b16 %v307, %v306
  %v311 = vpack.c.b16 %v309, %v308
  %314 = vmatpush.bf16.msra.mxu0 0
  %315 = vmatpush.bf16.msra.mxu0 0
  %316 = vmatpush.bf16.msra.mxu0 0
  %317 = vmatpush.bf16.msra.mxu0 0
  %318 = vmatpush.bf16.msra.mxu0 0
  %319 = vmatpush.bf16.msra.mxu0 0
  %320 = vmatpush.bf16.msra.mxu0 %v311
  %321 = vmatpush.bf16.msra.mxu0 %v310
  %322 = vmatmul.bf16.gmra.mxu0 %v281
  %v323 = vpop.f32.mrf.mxu0
  %v324 = vadd.f32 %v301, %v323
  %v325 = vpop.f32.mrf.mxu0
  %326 = vdwg.mxu0
  %v327 = vmul.f32 %v324, 0.5
  %v328 = vmul.f32 %v327, 1.442695
  %v329 = vpow.pop %v328
  %v330 = vld [vmem:[%s1] sm:$0x3]
  %v331 = vmul.f32 %v329, %v330
  %v332 = vadd.f32 %v293, %v331
  %v333 = vpack.c.bf16 %v332, %v332
  %v334 = vld [vmem:[%s11] sm:$0x3]
  %v335 = vld [vmem:[%s2 + $0x7] sm:$0x1]
  %v336 = vperm.slane %v335, 0
  %vm337 = vcmask 31744
  %v339 = vsel %vm337, %v333, 0
  %vm341 = vcmask 1041408
  %v343 = vsel %vm341, %v334, 0
  %345 = vmatpush.bf16.msra.mxu0 0
  %346 = vmatpush.bf16.msra.mxu0 0
  %347 = vmatpush.bf16.msra.mxu0 0
  %348 = vmatpush.bf16.msra.mxu0 0
  %349 = vmatpush.bf16.msra.mxu0 0
  %350 = vmatpush.bf16.msra.mxu0 0
  %351 = vmatpush.bf16.msra.mxu0 0
  %352 = vmatpush.bf16.msra.mxu0 %v343
  %353 = vmatmul.bf16.gmra.mxu0 %v339
  %v354 = vpop.f32.mrf.mxu0
  %v355 = vadd.f32 %v336, %v354
  %v356 = vpop.f32.mrf.mxu0
  %357 = vdwg.mxu0
  %vm358 = vcmp.ge.f32.partialorder %v355, 0.0
  %v359 = vmul.f32 %v355, 0.01
  %v360 = vsel %vm358, %v355, %v359
  %v361 = vpack.c.bf16 %v360, %v360
  %v362 = vld [vmem:[%s12] sm:$0xf]
  %v363 = vld [vmem:[%s12 + $0x4] sm:$0xf]
  %v364 = vld [vmem:[%s12 + $0x8] sm:$0xf]
  %v365 = vld [vmem:[%s12 + $0xc] sm:$0xf]
  %v366 = vld [vmem:[%s2 + $0x8] sm:$0x1]
  %v367 = vperm.slane %v366, 0
  %v372 = vunpack.c.l.b16 %v362
  %v373 = vunpack.c.l.b16 %v363
  %v374 = vunpack.c.l.b16 %v364
  %v375 = vunpack.c.l.b16 %v365
  %v376 = vpack.c.b16 %v373, %v372
  %v377 = vpack.c.b16 %v375, %v374
  %v381 = vsel %vm162, %v361, 0
  %383 = vmatpush.bf16.msra.mxu0 0
  %384 = vmatpush.bf16.msra.mxu0 0
  %385 = vmatpush.bf16.msra.mxu0 0
  %386 = vmatpush.bf16.msra.mxu0 0
  %387 = vmatpush.bf16.msra.mxu0 0
  %388 = vmatpush.bf16.msra.mxu0 0
  %389 = vmatpush.bf16.msra.mxu0 %v377
  %390 = vmatpush.bf16.msra.mxu0 %v376
  %391 = vmatmul.bf16.gmra.mxu0 %v381
  %v392 = vpop.f32.mrf.mxu0
  %v393 = vadd.f32 %v367, %v392
  %v394 = vpop.f32.mrf.mxu0
  %395 = vdwg.mxu0
  %vm396 = vcmp.ge.f32.partialorder %v393, 0.0
  %v397 = vmul.f32 %v393, 0.01
  %v398 = vsel %vm396, %v393, %v397
  %v399 = vpack.c.bf16 %v398, %v398
  %v400 = vld [vmem:[%s13] sm:$0xf]
  %v401 = vld [vmem:[%s13 + $0x4] sm:$0xf]
  %v402 = vld [vmem:[%s13 + $0x8] sm:$0xf]
  %v403 = vld [vmem:[%s13 + $0xc] sm:$0xf]
  %v404 = vld [vmem:[%s13 + $0x10] sm:$0xf]
  %v405 = vld [vmem:[%s13 + $0x14] sm:$0xf]
  %v406 = vld [vmem:[%s13 + $0x18] sm:$0xf]
  %v407 = vld [vmem:[%s13 + $0x1c] sm:$0xf]
  %v408 = vld [vmem:[%s13 + $0x20] sm:$0xf]
  %v409 = vld [vmem:[%s13 + $0x24] sm:$0xf]
  %v410 = vld [vmem:[%s13 + $0x28] sm:$0xf]
  %v411 = vld [vmem:[%s13 + $0x2c] sm:$0xf]
  %v412 = vld [vmem:[%s13 + $0x30] sm:$0xf]
  %v413 = vld [vmem:[%s13 + $0x34] sm:$0xf]
  %v414 = vld [vmem:[%s13 + $0x38] sm:$0xf]
  %v415 = vld [vmem:[%s13 + $0x3c] sm:$0xf]
  %v416 = vld [vmem:[%s13 + $0x40] sm:$0xf]
  %v417 = vld [vmem:[%s13 + $0x44] sm:$0xf]
  %v418 = vld [vmem:[%s13 + $0x48] sm:$0xf]
  %v419 = vld [vmem:[%s13 + $0x4c] sm:$0xf]
  %v420 = vld [vmem:[%s13 + $0x50] sm:$0xf]
  %v421 = vld [vmem:[%s13 + $0x54] sm:$0xf]
  %v422 = vld [vmem:[%s13 + $0x58] sm:$0xf]
  %v423 = vld [vmem:[%s13 + $0x5c] sm:$0xf]
  %v424 = vld [vmem:[%s13 + $0x60] sm:$0xf]
  %v425 = vld [vmem:[%s13 + $0x64] sm:$0xf]
  %v426 = vld [vmem:[%s13 + $0x68] sm:$0xf]
  %v427 = vld [vmem:[%s13 + $0x6c] sm:$0xf]
  %v428 = vld [vmem:[%s13 + $0x70] sm:$0xf]
  %v429 = vld [vmem:[%s13 + $0x74] sm:$0xf]
  %v430 = vld [vmem:[%s13 + $0x78] sm:$0xf]
  %v431 = vld [vmem:[%s13 + $0x7c] sm:$0xf]
  %v432 = vld [vmem:[%s3] sm:$0x1]
  %v433 = vld [vmem:[%s3 + $0x1] sm:$0x1]
  %v434 = vld [vmem:[%s3 + $0x2] sm:$0x1]
  %v435 = vld [vmem:[%s3 + $0x3] sm:$0x1]
  %v436 = vld [vmem:[%s3 + $0x4] sm:$0x1]
  %v437 = vld [vmem:[%s3 + $0x5] sm:$0x1]
  %v438 = vld [vmem:[%s3 + $0x6] sm:$0x1]
  %v439 = vld [vmem:[%s3 + $0x7] sm:$0x1]
  %v448 = vperm.slane %v432, 0
  %v449 = vperm.slane %v433, 0
  %v450 = vperm.slane %v434, 0
  %v451 = vperm.slane %v435, 0
  %v452 = vperm.slane %v436, 0
  %v453 = vperm.slane %v437, 0
  %v454 = vperm.slane %v438, 0
  %v455 = vperm.slane %v439, 0
  %v468 = vunpack.c.l.b16 %v400
  %v469 = vunpack.c.l.b16 %v401
  %v470 = vunpack.c.l.b16 %v402
  %v471 = vunpack.c.l.b16 %v403
  %v472 = vpack.c.b16 %v469, %v468
  %v473 = vpack.c.b16 %v471, %v470
  %v477 = vsel %vm162, %v399, 0
  %479 = vmatpush.bf16.msra.mxu0 0
  %480 = vmatpush.bf16.msra.mxu0 0
  %481 = vmatpush.bf16.msra.mxu0 0
  %482 = vmatpush.bf16.msra.mxu0 0
  %483 = vmatpush.bf16.msra.mxu0 0
  %484 = vmatpush.bf16.msra.mxu0 0
  %485 = vmatpush.bf16.msra.mxu0 %v473
  %486 = vmatpush.bf16.msra.mxu0 %v472
  %487 = vmatmul.bf16.gmra.mxu0 %v477
  %v488 = vpop.f32.mrf.mxu0
  %v489 = vadd.f32 %v448, %v488
  %v490 = vpop.f32.mrf.mxu0
  %491 = vdwg.mxu0
  %v496 = vunpack.c.l.b16 %v404
  %v497 = vunpack.c.l.b16 %v405
  %v498 = vunpack.c.l.b16 %v406
  %v499 = vunpack.c.l.b16 %v407
  %v500 = vpack.c.b16 %v497, %v496
  %v501 = vpack.c.b16 %v499, %v498
  %504 = vmatpush.bf16.msra.mxu0 0
  %505 = vmatpush.bf16.msra.mxu0 0
  %506 = vmatpush.bf16.msra.mxu0 0
  %507 = vmatpush.bf16.msra.mxu0 0
  %508 = vmatpush.bf16.msra.mxu0 0
  %509 = vmatpush.bf16.msra.mxu0 0
  %510 = vmatpush.bf16.msra.mxu0 %v501
  %511 = vmatpush.bf16.msra.mxu0 %v500
  %512 = vmatmul.bf16.gmra.mxu0 %v477
  %v513 = vpop.f32.mrf.mxu0
  %v514 = vadd.f32 %v449, %v513
  %v515 = vpop.f32.mrf.mxu0
  %516 = vdwg.mxu0
  %v521 = vunpack.c.l.b16 %v408
  %v522 = vunpack.c.l.b16 %v409
  %v523 = vunpack.c.l.b16 %v410
  %v524 = vunpack.c.l.b16 %v411
  %v525 = vpack.c.b16 %v522, %v521
  %v526 = vpack.c.b16 %v524, %v523
  %529 = vmatpush.bf16.msra.mxu0 0
  %530 = vmatpush.bf16.msra.mxu0 0
  %531 = vmatpush.bf16.msra.mxu0 0
  %532 = vmatpush.bf16.msra.mxu0 0
  %533 = vmatpush.bf16.msra.mxu0 0
  %534 = vmatpush.bf16.msra.mxu0 0
  %535 = vmatpush.bf16.msra.mxu0 %v526
  %536 = vmatpush.bf16.msra.mxu0 %v525
  %537 = vmatmul.bf16.gmra.mxu0 %v477
  %v538 = vpop.f32.mrf.mxu0
  %v539 = vadd.f32 %v450, %v538
  %v540 = vpop.f32.mrf.mxu0
  %541 = vdwg.mxu0
  %v546 = vunpack.c.l.b16 %v412
  %v547 = vunpack.c.l.b16 %v413
  %v548 = vunpack.c.l.b16 %v414
  %v549 = vunpack.c.l.b16 %v415
  %v550 = vpack.c.b16 %v547, %v546
  %v551 = vpack.c.b16 %v549, %v548
  %554 = vmatpush.bf16.msra.mxu0 0
  %555 = vmatpush.bf16.msra.mxu0 0
  %556 = vmatpush.bf16.msra.mxu0 0
  %557 = vmatpush.bf16.msra.mxu0 0
  %558 = vmatpush.bf16.msra.mxu0 0
  %559 = vmatpush.bf16.msra.mxu0 0
  %560 = vmatpush.bf16.msra.mxu0 %v551
  %561 = vmatpush.bf16.msra.mxu0 %v550
  %562 = vmatmul.bf16.gmra.mxu0 %v477
  %v563 = vpop.f32.mrf.mxu0
  %v564 = vadd.f32 %v451, %v563
  %v565 = vpop.f32.mrf.mxu0
  %566 = vdwg.mxu0
  %v571 = vunpack.c.l.b16 %v416
  %v572 = vunpack.c.l.b16 %v417
  %v573 = vunpack.c.l.b16 %v418
  %v574 = vunpack.c.l.b16 %v419
  %v575 = vpack.c.b16 %v572, %v571
  %v576 = vpack.c.b16 %v574, %v573
  %579 = vmatpush.bf16.msra.mxu0 0
  %580 = vmatpush.bf16.msra.mxu0 0
  %581 = vmatpush.bf16.msra.mxu0 0
  %582 = vmatpush.bf16.msra.mxu0 0
  %583 = vmatpush.bf16.msra.mxu0 0
  %584 = vmatpush.bf16.msra.mxu0 0
  %585 = vmatpush.bf16.msra.mxu0 %v576
  %586 = vmatpush.bf16.msra.mxu0 %v575
  %587 = vmatmul.bf16.gmra.mxu0 %v477
  %v588 = vpop.f32.mrf.mxu0
  %v589 = vadd.f32 %v452, %v588
  %v590 = vpop.f32.mrf.mxu0
  %591 = vdwg.mxu0
  %v596 = vunpack.c.l.b16 %v420
  %v597 = vunpack.c.l.b16 %v421
  %v598 = vunpack.c.l.b16 %v422
  %v599 = vunpack.c.l.b16 %v423
  %v600 = vpack.c.b16 %v597, %v596
  %v601 = vpack.c.b16 %v599, %v598
  %604 = vmatpush.bf16.msra.mxu0 0
  %605 = vmatpush.bf16.msra.mxu0 0
  %606 = vmatpush.bf16.msra.mxu0 0
  %607 = vmatpush.bf16.msra.mxu0 0
  %608 = vmatpush.bf16.msra.mxu0 0
  %609 = vmatpush.bf16.msra.mxu0 0
  %610 = vmatpush.bf16.msra.mxu0 %v601
  %611 = vmatpush.bf16.msra.mxu0 %v600
  %612 = vmatmul.bf16.gmra.mxu0 %v477
  %v613 = vpop.f32.mrf.mxu0
  %v614 = vadd.f32 %v453, %v613
  %v615 = vpop.f32.mrf.mxu0
  %616 = vdwg.mxu0
  %v621 = vunpack.c.l.b16 %v424
  %v622 = vunpack.c.l.b16 %v425
  %v623 = vunpack.c.l.b16 %v426
  %v624 = vunpack.c.l.b16 %v427
  %v625 = vpack.c.b16 %v622, %v621
  %v626 = vpack.c.b16 %v624, %v623
  %629 = vmatpush.bf16.msra.mxu0 0
  %630 = vmatpush.bf16.msra.mxu0 0
  %631 = vmatpush.bf16.msra.mxu0 0
  %632 = vmatpush.bf16.msra.mxu0 0
  %633 = vmatpush.bf16.msra.mxu0 0
  %634 = vmatpush.bf16.msra.mxu0 0
  %635 = vmatpush.bf16.msra.mxu0 %v626
  %636 = vmatpush.bf16.msra.mxu0 %v625
  %637 = vmatmul.bf16.gmra.mxu0 %v477
  %v638 = vpop.f32.mrf.mxu0
  %v639 = vadd.f32 %v454, %v638
  %v640 = vpop.f32.mrf.mxu0
  %641 = vdwg.mxu0
  %v646 = vunpack.c.l.b16 %v428
  %v647 = vunpack.c.l.b16 %v429
  %v648 = vunpack.c.l.b16 %v430
  %v649 = vunpack.c.l.b16 %v431
  %v650 = vpack.c.b16 %v647, %v646
  %v651 = vpack.c.b16 %v649, %v648
  %654 = vmatpush.bf16.msra.mxu0 0
  %655 = vmatpush.bf16.msra.mxu0 0
  %656 = vmatpush.bf16.msra.mxu0 0
  %657 = vmatpush.bf16.msra.mxu0 0
  %658 = vmatpush.bf16.msra.mxu0 0
  %659 = vmatpush.bf16.msra.mxu0 0
  %660 = vmatpush.bf16.msra.mxu0 %v651
  %661 = vmatpush.bf16.msra.mxu0 %v650
  %662 = vmatmul.bf16.gmra.mxu0 %v477
  %v663 = vpop.f32.mrf.mxu0
  %v664 = vadd.f32 %v455, %v663
  %v665 = vpop.f32.mrf.mxu0
  %666 = vdwg.mxu0
  %vm667 = vcmp.ge.f32.partialorder %v489, 0.0
  %vm668 = vcmp.ge.f32.partialorder %v514, 0.0
  %vm669 = vcmp.ge.f32.partialorder %v539, 0.0
  %vm670 = vcmp.ge.f32.partialorder %v564, 0.0
  %vm671 = vcmp.ge.f32.partialorder %v589, 0.0
  %vm672 = vcmp.ge.f32.partialorder %v614, 0.0
  %vm673 = vcmp.ge.f32.partialorder %v639, 0.0
  %vm674 = vcmp.ge.f32.partialorder %v664, 0.0
  %v675 = vmul.f32 %v489, 0.01
  %v676 = vmul.f32 %v514, 0.01
  %v677 = vmul.f32 %v539, 0.01
  %v678 = vmul.f32 %v564, 0.01
  %v679 = vmul.f32 %v589, 0.01
  %v680 = vmul.f32 %v614, 0.01
  %v681 = vmul.f32 %v639, 0.01
  %v682 = vmul.f32 %v664, 0.01
  %v683 = vsel %vm667, %v489, %v675
  %v684 = vsel %vm668, %v514, %v676
  %v685 = vsel %vm669, %v539, %v677
  %v686 = vsel %vm670, %v564, %v678
  %v687 = vsel %vm671, %v589, %v679
  %v688 = vsel %vm672, %v614, %v680
  %v689 = vsel %vm673, %v639, %v681
  %v690 = vsel %vm674, %v664, %v682
  %v691 = vld [vmem:[%s14] sm:$0xf]
  %v692 = vpack.c.bf16 %v683, %v683
  %v693 = vpack.c.bf16 %v684, %v684
  %v694 = vpack.c.bf16 %v685, %v685
  %v695 = vpack.c.bf16 %v686, %v686
  %v696 = vpack.c.bf16 %v687, %v687
  %v697 = vpack.c.bf16 %v688, %v688
  %v698 = vpack.c.bf16 %v689, %v689
  %v699 = vpack.c.bf16 %v690, %v690
  %v700 = vld [vmem:[%s2 + $0x9] sm:$0x1]
  %v701 = vperm.slane %v700, 0
  %v703 = vsel %vm65, %v692, 0
  %v706 = vsel %vm69, %v691, 0
  %708 = vmatpush.bf16.msra.mxu0 0
  %709 = vmatpush.bf16.msra.mxu0 0
  %710 = vmatpush.bf16.msra.mxu0 0
  %711 = vmatpush.bf16.msra.mxu0 0
  %712 = vmatpush.bf16.msra.mxu0 0
  %713 = vmatpush.bf16.msra.mxu0 0
  %714 = vmatpush.bf16.msra.mxu0 0
  %715 = vmatpush.bf16.msra.mxu0 %v706
  %716 = vmatmul.bf16.gmra.mxu0 %v703
  %v717 = vpop.f32.mrf.mxu0
  %v718 = vadd.f32 %v701, %v717
  %v719 = vpop.f32.mrf.mxu0
  %720 = vdwg.mxu0
  %v722 = vsel %vm65, %v693, 0
  %724 = vmatpush.bf16.msra.mxu0 0
  %725 = vmatpush.bf16.msra.mxu0 0
  %726 = vmatpush.bf16.msra.mxu0 0
  %727 = vmatpush.bf16.msra.mxu0 0
  %728 = vmatpush.bf16.msra.mxu0 0
  %729 = vmatpush.bf16.msra.mxu0 0
  %730 = vmatpush.bf16.msra.mxu0 0
  %731 = vmatpush.bf16.msra.mxu0 %v706
  %732 = vmatmul.bf16.gmra.mxu0 %v722
  %v733 = vpop.f32.mrf.mxu0
  %v734 = vadd.f32 %v701, %v733
  %v735 = vpop.f32.mrf.mxu0
  %736 = vdwg.mxu0
  %v738 = vsel %vm65, %v694, 0
  %740 = vmatpush.bf16.msra.mxu0 0
  %741 = vmatpush.bf16.msra.mxu0 0
  %742 = vmatpush.bf16.msra.mxu0 0
  %743 = vmatpush.bf16.msra.mxu0 0
  %744 = vmatpush.bf16.msra.mxu0 0
  %745 = vmatpush.bf16.msra.mxu0 0
  %746 = vmatpush.bf16.msra.mxu0 0
  %747 = vmatpush.bf16.msra.mxu0 %v706
  %748 = vmatmul.bf16.gmra.mxu0 %v738
  %v749 = vpop.f32.mrf.mxu0
  %v750 = vadd.f32 %v701, %v749
  %v751 = vpop.f32.mrf.mxu0
  %752 = vdwg.mxu0
  %v754 = vsel %vm65, %v695, 0
  %756 = vmatpush.bf16.msra.mxu0 0
  %757 = vmatpush.bf16.msra.mxu0 0
  %758 = vmatpush.bf16.msra.mxu0 0
  %759 = vmatpush.bf16.msra.mxu0 0
  %760 = vmatpush.bf16.msra.mxu0 0
  %761 = vmatpush.bf16.msra.mxu0 0
  %762 = vmatpush.bf16.msra.mxu0 0
  %763 = vmatpush.bf16.msra.mxu0 %v706
  %764 = vmatmul.bf16.gmra.mxu0 %v754
  %v765 = vpop.f32.mrf.mxu0
  %v766 = vadd.f32 %v701, %v765
  %v767 = vpop.f32.mrf.mxu0
  %768 = vdwg.mxu0
  %v770 = vsel %vm65, %v696, 0
  %772 = vmatpush.bf16.msra.mxu0 0
  %773 = vmatpush.bf16.msra.mxu0 0
  %774 = vmatpush.bf16.msra.mxu0 0
  %775 = vmatpush.bf16.msra.mxu0 0
  %776 = vmatpush.bf16.msra.mxu0 0
  %777 = vmatpush.bf16.msra.mxu0 0
  %778 = vmatpush.bf16.msra.mxu0 0
  %779 = vmatpush.bf16.msra.mxu0 %v706
  %780 = vmatmul.bf16.gmra.mxu0 %v770
  %v781 = vpop.f32.mrf.mxu0
  %v782 = vadd.f32 %v701, %v781
  %v783 = vpop.f32.mrf.mxu0
  %784 = vdwg.mxu0
  %v786 = vsel %vm65, %v697, 0
  %788 = vmatpush.bf16.msra.mxu0 0
  %789 = vmatpush.bf16.msra.mxu0 0
  %790 = vmatpush.bf16.msra.mxu0 0
  %791 = vmatpush.bf16.msra.mxu0 0
  %792 = vmatpush.bf16.msra.mxu0 0
  %793 = vmatpush.bf16.msra.mxu0 0
  %794 = vmatpush.bf16.msra.mxu0 0
  %795 = vmatpush.bf16.msra.mxu0 %v706
  %796 = vmatmul.bf16.gmra.mxu0 %v786
  %v797 = vpop.f32.mrf.mxu0
  %v798 = vadd.f32 %v701, %v797
  %v799 = vpop.f32.mrf.mxu0
  %800 = vdwg.mxu0
  %v802 = vsel %vm65, %v698, 0
  %804 = vmatpush.bf16.msra.mxu0 0
  %805 = vmatpush.bf16.msra.mxu0 0
  %806 = vmatpush.bf16.msra.mxu0 0
  %807 = vmatpush.bf16.msra.mxu0 0
  %808 = vmatpush.bf16.msra.mxu0 0
  %809 = vmatpush.bf16.msra.mxu0 0
  %810 = vmatpush.bf16.msra.mxu0 0
  %811 = vmatpush.bf16.msra.mxu0 %v706
  %812 = vmatmul.bf16.gmra.mxu0 %v802
  %v813 = vpop.f32.mrf.mxu0
  %v814 = vadd.f32 %v701, %v813
  %v815 = vpop.f32.mrf.mxu0
  %816 = vdwg.mxu0
  %v818 = vsel %vm65, %v699, 0
  %820 = vmatpush.bf16.msra.mxu0 0
  %821 = vmatpush.bf16.msra.mxu0 0
  %822 = vmatpush.bf16.msra.mxu0 0
  %823 = vmatpush.bf16.msra.mxu0 0
  %824 = vmatpush.bf16.msra.mxu0 0
  %825 = vmatpush.bf16.msra.mxu0 0
  %826 = vmatpush.bf16.msra.mxu0 0
  %827 = vmatpush.bf16.msra.mxu0 %v706
  %828 = vmatmul.bf16.gmra.mxu0 %v818
  %v829 = vpop.f32.mrf.mxu0
  %v830 = vadd.f32 %v701, %v829
  %v831 = vpop.f32.mrf.mxu0
  %832 = vdwg.mxu0
  %vm833 = vcmp.ge.f32.partialorder %v718, 0.0
  %vm834 = vcmp.ge.f32.partialorder %v734, 0.0
  %vm835 = vcmp.ge.f32.partialorder %v750, 0.0
  %vm836 = vcmp.ge.f32.partialorder %v766, 0.0
  %vm837 = vcmp.ge.f32.partialorder %v782, 0.0
  %vm838 = vcmp.ge.f32.partialorder %v798, 0.0
  %vm839 = vcmp.ge.f32.partialorder %v814, 0.0
  %vm840 = vcmp.ge.f32.partialorder %v830, 0.0
  %v841 = vmul.f32 %v718, 0.01
  %v842 = vmul.f32 %v734, 0.01
  %v843 = vmul.f32 %v750, 0.01
  %v844 = vmul.f32 %v766, 0.01
  %v845 = vmul.f32 %v782, 0.01
  %v846 = vmul.f32 %v798, 0.01
  %v847 = vmul.f32 %v814, 0.01
  %v848 = vmul.f32 %v830, 0.01
  %v849 = vsel %vm833, %v718, %v841
  %v850 = vsel %vm834, %v734, %v842
  %v851 = vsel %vm835, %v750, %v843
  %v852 = vsel %vm836, %v766, %v844
  %v853 = vsel %vm837, %v782, %v845
  %v854 = vsel %vm838, %v798, %v846
  %v855 = vsel %vm839, %v814, %v847
  %v856 = vsel %vm840, %v830, %v848
  %v857 = vld [vmem:[%s15] sm:$0xf]
  %v858 = vpack.c.bf16 %v849, %v849
  %v859 = vpack.c.bf16 %v850, %v850
  %v860 = vpack.c.bf16 %v851, %v851
  %v861 = vpack.c.bf16 %v852, %v852
  %v862 = vpack.c.bf16 %v853, %v853
  %v863 = vpack.c.bf16 %v854, %v854
  %v864 = vpack.c.bf16 %v855, %v855
  %v865 = vpack.c.bf16 %v856, %v856
  %v866 = vld [vmem:[%s2 + $0xa] sm:$0x1]
  %v867 = vperm.slane %v866, 0
  %v869 = vsel %vm65, %v858, 0
  %v872 = vsel %vm69, %v857, 0
  %874 = vmatpush.bf16.msra.mxu0 0
  %875 = vmatpush.bf16.msra.mxu0 0
  %876 = vmatpush.bf16.msra.mxu0 0
  %877 = vmatpush.bf16.msra.mxu0 0
  %878 = vmatpush.bf16.msra.mxu0 0
  %879 = vmatpush.bf16.msra.mxu0 0
  %880 = vmatpush.bf16.msra.mxu0 0
  %881 = vmatpush.bf16.msra.mxu0 %v872
  %882 = vmatmul.bf16.gmra.mxu0 %v869
  %v883 = vpop.f32.mrf.mxu0
  %v884 = vadd.f32 %v867, %v883
  %v885 = vpop.f32.mrf.mxu0
  %886 = vdwg.mxu0
  %v888 = vsel %vm65, %v859, 0
  %890 = vmatpush.bf16.msra.mxu0 0
  %891 = vmatpush.bf16.msra.mxu0 0
  %892 = vmatpush.bf16.msra.mxu0 0
  %893 = vmatpush.bf16.msra.mxu0 0
  %894 = vmatpush.bf16.msra.mxu0 0
  %895 = vmatpush.bf16.msra.mxu0 0
  %896 = vmatpush.bf16.msra.mxu0 0
  %897 = vmatpush.bf16.msra.mxu0 %v872
  %898 = vmatmul.bf16.gmra.mxu0 %v888
  %v899 = vpop.f32.mrf.mxu0
  %v900 = vadd.f32 %v867, %v899
  %v901 = vpop.f32.mrf.mxu0
  %902 = vdwg.mxu0
  %v904 = vsel %vm65, %v860, 0
  %906 = vmatpush.bf16.msra.mxu0 0
  %907 = vmatpush.bf16.msra.mxu0 0
  %908 = vmatpush.bf16.msra.mxu0 0
  %909 = vmatpush.bf16.msra.mxu0 0
  %910 = vmatpush.bf16.msra.mxu0 0
  %911 = vmatpush.bf16.msra.mxu0 0
  %912 = vmatpush.bf16.msra.mxu0 0
  %913 = vmatpush.bf16.msra.mxu0 %v872
  %914 = vmatmul.bf16.gmra.mxu0 %v904
  %v915 = vpop.f32.mrf.mxu0
  %v916 = vadd.f32 %v867, %v915
  %v917 = vpop.f32.mrf.mxu0
  %918 = vdwg.mxu0
  %v920 = vsel %vm65, %v861, 0
  %922 = vmatpush.bf16.msra.mxu0 0
  %923 = vmatpush.bf16.msra.mxu0 0
  %924 = vmatpush.bf16.msra.mxu0 0
  %925 = vmatpush.bf16.msra.mxu0 0
  %926 = vmatpush.bf16.msra.mxu0 0
  %927 = vmatpush.bf16.msra.mxu0 0
  %928 = vmatpush.bf16.msra.mxu0 0
  %929 = vmatpush.bf16.msra.mxu0 %v872
  %930 = vmatmul.bf16.gmra.mxu0 %v920
  %v931 = vpop.f32.mrf.mxu0
  %v932 = vadd.f32 %v867, %v931
  %v933 = vpop.f32.mrf.mxu0
  %934 = vdwg.mxu0
  %v936 = vsel %vm65, %v862, 0
  %938 = vmatpush.bf16.msra.mxu0 0
  %939 = vmatpush.bf16.msra.mxu0 0
  %940 = vmatpush.bf16.msra.mxu0 0
  %941 = vmatpush.bf16.msra.mxu0 0
  %942 = vmatpush.bf16.msra.mxu0 0
  %943 = vmatpush.bf16.msra.mxu0 0
  %944 = vmatpush.bf16.msra.mxu0 0
  %945 = vmatpush.bf16.msra.mxu0 %v872
  %946 = vmatmul.bf16.gmra.mxu0 %v936
  %v947 = vpop.f32.mrf.mxu0
  %v948 = vadd.f32 %v867, %v947
  %v949 = vpop.f32.mrf.mxu0
  %950 = vdwg.mxu0
  %v952 = vsel %vm65, %v863, 0
  %954 = vmatpush.bf16.msra.mxu0 0
  %955 = vmatpush.bf16.msra.mxu0 0
  %956 = vmatpush.bf16.msra.mxu0 0
  %957 = vmatpush.bf16.msra.mxu0 0
  %958 = vmatpush.bf16.msra.mxu0 0
  %959 = vmatpush.bf16.msra.mxu0 0
  %960 = vmatpush.bf16.msra.mxu0 0
  %961 = vmatpush.bf16.msra.mxu0 %v872
  %962 = vmatmul.bf16.gmra.mxu0 %v952
  %v963 = vpop.f32.mrf.mxu0
  %v964 = vadd.f32 %v867, %v963
  %v965 = vpop.f32.mrf.mxu0
  %966 = vdwg.mxu0
  %v968 = vsel %vm65, %v864, 0
  %970 = vmatpush.bf16.msra.mxu0 0
  %971 = vmatpush.bf16.msra.mxu0 0
  %972 = vmatpush.bf16.msra.mxu0 0
  %973 = vmatpush.bf16.msra.mxu0 0
  %974 = vmatpush.bf16.msra.mxu0 0
  %975 = vmatpush.bf16.msra.mxu0 0
  %976 = vmatpush.bf16.msra.mxu0 0
  %977 = vmatpush.bf16.msra.mxu0 %v872
  %978 = vmatmul.bf16.gmra.mxu0 %v968
  %v979 = vpop.f32.mrf.mxu0
  %v980 = vadd.f32 %v867, %v979
  %v981 = vpop.f32.mrf.mxu0
  %982 = vdwg.mxu0
  %v984 = vsel %vm65, %v865, 0
  %986 = vmatpush.bf16.msra.mxu0 0
  %987 = vmatpush.bf16.msra.mxu0 0
  %988 = vmatpush.bf16.msra.mxu0 0
  %989 = vmatpush.bf16.msra.mxu0 0
  %990 = vmatpush.bf16.msra.mxu0 0
  %991 = vmatpush.bf16.msra.mxu0 0
  %992 = vmatpush.bf16.msra.mxu0 0
  %993 = vmatpush.bf16.msra.mxu0 %v872
  %994 = vmatmul.bf16.gmra.mxu0 %v984
  %v995 = vpop.f32.mrf.mxu0
  %v996 = vadd.f32 %v867, %v995
  %v997 = vpop.f32.mrf.mxu0
  %998 = vdwg.mxu0
  %vm999 = vcmp.ge.f32.partialorder %v884, 0.0
  %vm1000 = vcmp.ge.f32.partialorder %v900, 0.0
  %vm1001 = vcmp.ge.f32.partialorder %v916, 0.0
  %vm1002 = vcmp.ge.f32.partialorder %v932, 0.0
  %vm1003 = vcmp.ge.f32.partialorder %v948, 0.0
  %vm1004 = vcmp.ge.f32.partialorder %v964, 0.0
  %vm1005 = vcmp.ge.f32.partialorder %v980, 0.0
  %vm1006 = vcmp.ge.f32.partialorder %v996, 0.0
  %v1007 = vmul.f32 %v884, 0.01
  %v1008 = vmul.f32 %v900, 0.01
  %v1009 = vmul.f32 %v916, 0.01
  %v1010 = vmul.f32 %v932, 0.01
  %v1011 = vmul.f32 %v948, 0.01
  %v1012 = vmul.f32 %v964, 0.01
  %v1013 = vmul.f32 %v980, 0.01
  %v1014 = vmul.f32 %v996, 0.01
  %v1015 = vsel %vm999, %v884, %v1007
  %v1016 = vsel %vm1000, %v900, %v1008
  %v1017 = vsel %vm1001, %v916, %v1009
  %v1018 = vsel %vm1002, %v932, %v1010
  %v1019 = vsel %vm1003, %v948, %v1011
  %v1020 = vsel %vm1004, %v964, %v1012
  %v1021 = vsel %vm1005, %v980, %v1013
  %v1022 = vsel %vm1006, %v996, %v1014
  %v1023 = vld [vmem:[%s16] sm:$0xf]
  %v1024 = vpack.c.bf16 %v1015, %v1015
  %v1025 = vpack.c.bf16 %v1016, %v1016
  %v1026 = vpack.c.bf16 %v1017, %v1017
  %v1027 = vpack.c.bf16 %v1018, %v1018
  %v1028 = vpack.c.bf16 %v1019, %v1019
  %v1029 = vpack.c.bf16 %v1020, %v1020
  %v1030 = vpack.c.bf16 %v1021, %v1021
  %v1031 = vpack.c.bf16 %v1022, %v1022
  %v1032 = vld [vmem:[%s2 + $0xb] sm:$0x1]
  %v1033 = vperm.slane %v1032, 0
  %v1035 = vsel %vm65, %v1024, 0
  %v1038 = vsel %vm69, %v1023, 0
  %1040 = vmatpush.bf16.msra.mxu0 0
  %1041 = vmatpush.bf16.msra.mxu0 0
  %1042 = vmatpush.bf16.msra.mxu0 0
  %1043 = vmatpush.bf16.msra.mxu0 0
  %1044 = vmatpush.bf16.msra.mxu0 0
  %1045 = vmatpush.bf16.msra.mxu0 0
  %1046 = vmatpush.bf16.msra.mxu0 0
  %1047 = vmatpush.bf16.msra.mxu0 %v1038
  %1048 = vmatmul.bf16.gmra.mxu0 %v1035
  %v1049 = vpop.f32.mrf.mxu0
  %v1050 = vadd.f32 %v1033, %v1049
  %v1051 = vpop.f32.mrf.mxu0
  %1052 = vdwg.mxu0
  %v1054 = vsel %vm65, %v1025, 0
  %1056 = vmatpush.bf16.msra.mxu0 0
  %1057 = vmatpush.bf16.msra.mxu0 0
  %1058 = vmatpush.bf16.msra.mxu0 0
  %1059 = vmatpush.bf16.msra.mxu0 0
  %1060 = vmatpush.bf16.msra.mxu0 0
  %1061 = vmatpush.bf16.msra.mxu0 0
  %1062 = vmatpush.bf16.msra.mxu0 0
  %1063 = vmatpush.bf16.msra.mxu0 %v1038
  %1064 = vmatmul.bf16.gmra.mxu0 %v1054
  %v1065 = vpop.f32.mrf.mxu0
  %v1066 = vadd.f32 %v1033, %v1065
  %v1067 = vpop.f32.mrf.mxu0
  %1068 = vdwg.mxu0
  %v1070 = vsel %vm65, %v1026, 0
  %1072 = vmatpush.bf16.msra.mxu0 0
  %1073 = vmatpush.bf16.msra.mxu0 0
  %1074 = vmatpush.bf16.msra.mxu0 0
  %1075 = vmatpush.bf16.msra.mxu0 0
  %1076 = vmatpush.bf16.msra.mxu0 0
  %1077 = vmatpush.bf16.msra.mxu0 0
  %1078 = vmatpush.bf16.msra.mxu0 0
  %1079 = vmatpush.bf16.msra.mxu0 %v1038
  %1080 = vmatmul.bf16.gmra.mxu0 %v1070
  %v1081 = vpop.f32.mrf.mxu0
  %v1082 = vadd.f32 %v1033, %v1081
  %v1083 = vpop.f32.mrf.mxu0
  %1084 = vdwg.mxu0
  %v1086 = vsel %vm65, %v1027, 0
  %1088 = vmatpush.bf16.msra.mxu0 0
  %1089 = vmatpush.bf16.msra.mxu0 0
  %1090 = vmatpush.bf16.msra.mxu0 0
  %1091 = vmatpush.bf16.msra.mxu0 0
  %1092 = vmatpush.bf16.msra.mxu0 0
  %1093 = vmatpush.bf16.msra.mxu0 0
  %1094 = vmatpush.bf16.msra.mxu0 0
  %1095 = vmatpush.bf16.msra.mxu0 %v1038
  %1096 = vmatmul.bf16.gmra.mxu0 %v1086
  %v1097 = vpop.f32.mrf.mxu0
  %v1098 = vadd.f32 %v1033, %v1097
  %v1099 = vpop.f32.mrf.mxu0
  %1100 = vdwg.mxu0
  %v1102 = vsel %vm65, %v1028, 0
  %1104 = vmatpush.bf16.msra.mxu0 0
  %1105 = vmatpush.bf16.msra.mxu0 0
  %1106 = vmatpush.bf16.msra.mxu0 0
  %1107 = vmatpush.bf16.msra.mxu0 0
  %1108 = vmatpush.bf16.msra.mxu0 0
  %1109 = vmatpush.bf16.msra.mxu0 0
  %1110 = vmatpush.bf16.msra.mxu0 0
  %1111 = vmatpush.bf16.msra.mxu0 %v1038
  %1112 = vmatmul.bf16.gmra.mxu0 %v1102
  %v1113 = vpop.f32.mrf.mxu0
  %v1114 = vadd.f32 %v1033, %v1113
  %v1115 = vpop.f32.mrf.mxu0
  %1116 = vdwg.mxu0
  %v1118 = vsel %vm65, %v1029, 0
  %1120 = vmatpush.bf16.msra.mxu0 0
  %1121 = vmatpush.bf16.msra.mxu0 0
  %1122 = vmatpush.bf16.msra.mxu0 0
  %1123 = vmatpush.bf16.msra.mxu0 0
  %1124 = vmatpush.bf16.msra.mxu0 0
  %1125 = vmatpush.bf16.msra.mxu0 0
  %1126 = vmatpush.bf16.msra.mxu0 0
  %1127 = vmatpush.bf16.msra.mxu0 %v1038
  %1128 = vmatmul.bf16.gmra.mxu0 %v1118
  %v1129 = vpop.f32.mrf.mxu0
  %v1130 = vadd.f32 %v1033, %v1129
  %v1131 = vpop.f32.mrf.mxu0
  %1132 = vdwg.mxu0
  %v1134 = vsel %vm65, %v1030, 0
  %1136 = vmatpush.bf16.msra.mxu0 0
  %1137 = vmatpush.bf16.msra.mxu0 0
  %1138 = vmatpush.bf16.msra.mxu0 0
  %1139 = vmatpush.bf16.msra.mxu0 0
  %1140 = vmatpush.bf16.msra.mxu0 0
  %1141 = vmatpush.bf16.msra.mxu0 0
  %1142 = vmatpush.bf16.msra.mxu0 0
  %1143 = vmatpush.bf16.msra.mxu0 %v1038
  %1144 = vmatmul.bf16.gmra.mxu0 %v1134
  %v1145 = vpop.f32.mrf.mxu0
  %v1146 = vadd.f32 %v1033, %v1145
  %v1147 = vpop.f32.mrf.mxu0
  %1148 = vdwg.mxu0
  %v1150 = vsel %vm65, %v1031, 0
  %1152 = vmatpush.bf16.msra.mxu0 0
  %1153 = vmatpush.bf16.msra.mxu0 0
  %1154 = vmatpush.bf16.msra.mxu0 0
  %1155 = vmatpush.bf16.msra.mxu0 0
  %1156 = vmatpush.bf16.msra.mxu0 0
  %1157 = vmatpush.bf16.msra.mxu0 0
  %1158 = vmatpush.bf16.msra.mxu0 0
  %1159 = vmatpush.bf16.msra.mxu0 %v1038
  %1160 = vmatmul.bf16.gmra.mxu0 %v1150
  %v1161 = vpop.f32.mrf.mxu0
  %v1162 = vadd.f32 %v1033, %v1161
  %v1163 = vpop.f32.mrf.mxu0
  %1164 = vdwg.mxu0
  %vm1165 = vcmp.ge.f32.partialorder %v1050, 0.0
  %vm1166 = vcmp.ge.f32.partialorder %v1066, 0.0
  %vm1167 = vcmp.ge.f32.partialorder %v1082, 0.0
  %vm1168 = vcmp.ge.f32.partialorder %v1098, 0.0
  %vm1169 = vcmp.ge.f32.partialorder %v1114, 0.0
  %vm1170 = vcmp.ge.f32.partialorder %v1130, 0.0
  %vm1171 = vcmp.ge.f32.partialorder %v1146, 0.0
  %vm1172 = vcmp.ge.f32.partialorder %v1162, 0.0
  %v1173 = vmul.f32 %v1050, 0.01
  %v1174 = vmul.f32 %v1066, 0.01
  %v1175 = vmul.f32 %v1082, 0.01
  %v1176 = vmul.f32 %v1098, 0.01
  %v1177 = vmul.f32 %v1114, 0.01
  %v1178 = vmul.f32 %v1130, 0.01
  %v1179 = vmul.f32 %v1146, 0.01
  %v1180 = vmul.f32 %v1162, 0.01
  %v1181 = vsel %vm1165, %v1050, %v1173
  %v1182 = vsel %vm1166, %v1066, %v1174
  %v1183 = vsel %vm1167, %v1082, %v1175
  %v1184 = vsel %vm1168, %v1098, %v1176
  %v1185 = vsel %vm1169, %v1114, %v1177
  %v1186 = vsel %vm1170, %v1130, %v1178
  %v1187 = vsel %vm1171, %v1146, %v1179
  %v1188 = vsel %vm1172, %v1162, %v1180
  %vm1189 = vcmask 25600
  %1190 = vst.msk [vmem:[%s17] sm:$0x3] %vm1189, %v332
  %s1191 = scalar_lea.vmem %s17, 2
  %1192 = vst.msk [vmem:[%s1191] sm:$0x3] %vm1189, %v293
  %s1193 = scalar_lea.vmem %s17, 4
  %1194 = vst.msk [vmem:[%s1193] sm:$0x3] %vm1189, %v324
  %vm1195 = vcmask 58368
  %1196 = vst.msk [vmem:[%s18] sm:$0x3] %vm1195, %v1181
  %1197 = vst.msk [vmem:[%s18 + $0x2] sm:$0x3] %vm1195, %v1182
  %1198 = vst.msk [vmem:[%s18 + $0x4] sm:$0x3] %vm1195, %v1183
  %1199 = vst.msk [vmem:[%s18 + $0x6] sm:$0x3] %vm1195, %v1184
  %1200 = vst.msk [vmem:[%s18 + $0x8] sm:$0x3] %vm1195, %v1185
  %1201 = vst.msk [vmem:[%s18 + $0xa] sm:$0x3] %vm1195, %v1186
  %1202 = vst.msk [vmem:[%s18 + $0xc] sm:$0x3] %vm1195, %v1187
  %1203 = vst.msk [vmem:[%s18 + $0xe] sm:$0x3] %vm1195, %v1188
  // Predicated region
  $region70: #{deepset_vae_forward.1} parent=0 // pred_check
    _
  $region71: #{deepset_vae_forward.1} parent=0 // pred_check_branch
    %1205 = sbr.rel (0) target = $region73
  $region72: #{deepset_vae_forward.1} parent=0 // pred_region
    _
  $region73: #{deepset_vae_forward.1} parent=0 // pred_fallthru
    _
  // Predicated region
  $region74: #{deepset_vae_forward.1} parent=0 // pred_check
    _
  $region75: #{deepset_vae_forward.1} parent=0 // pred_check_branch
    %1207 = sbr.rel (0) target = $region77
  $region76: #{deepset_vae_forward.1} parent=0 // pred_region
    _
  $region77: #{deepset_vae_forward.1} parent=0 // pred_fallthru
    _
  // Predicated region
  $region78: #{deepset_vae_forward.1} parent=0 // pred_check
    _
  $region79: #{deepset_vae_forward.1} parent=0 // pred_check_branch
    %1209 = sbr.rel (0) target = $region81
  $region80: #{deepset_vae_forward.1} parent=0 // pred_region
    _
  $region81: #{deepset_vae_forward.1} parent=0 // pred_fallthru
    _
  // Predicated region
  $region82: #{deepset_vae_forward.1} parent=0 // pred_check
    _
  $region83: #{deepset_vae_forward.1} parent=0 // pred_check_branch
    %1211 = sbr.rel (0) target = $region85
  $region84: #{deepset_vae_forward.1} parent=0 // pred_region
    _
  $region85: #{deepset_vae_forward.1} parent=0 // pred_fallthru
    _

</llo_original>
